<compile_context>
chip_gen: v7x
topology: tpu7x:2x2x1
jax: 0.10.0
libtpu: 0.0.40
codegen_flags: <defaults>
</compile_context>

<pallas_src>
import math
import functools

import jax
import jax.numpy as jnp
import numpy as np
from jax import lax
from jax.experimental import pallas as pl
from jax.experimental.pallas import tpu as pltpu


def _fccaps_em_kernel(x_ref, w_ref, cen_ref, a_ref, bu_ref, ba_ref,
                      mu_ref, act_ref, *, routing_iters, out_caps, pose_dim):
    f32 = jnp.float32
    O = out_caps
    P = pose_dim
    OP = O * P
    LP = act_ref.shape[-1]                           # lane-padded activation width

    # ---- selector matrices built in-kernel (no HBM streams for constants) ----
    ro = lax.broadcasted_iota(jnp.int32, (O, OP), 0)
    co = lax.broadcasted_iota(jnp.int32, (O, OP), 1)
    E_exp = ((co >= ro * P) & (co < (ro + 1) * P)).astype(f32)      # (O, OP): o -> (o,p)
    rr = lax.broadcasted_iota(jnp.int32, (OP, O), 0)
    cr = lax.broadcasted_iota(jnp.int32, (OP, O), 1)
    E_red = ((rr >= cr * P) & (rr < (cr + 1) * P)).astype(f32)      # (OP, O): (o,p) -> o
    rp = lax.broadcasted_iota(jnp.int32, (O, LP), 0)
    cp = lax.broadcasted_iota(jnp.int32, (O, LP), 1)
    E_pad = (rp == cp).astype(f32)                                   # (O, LP): o -> lane o

    # ---- vote computation: ONE dense MXU matmul over the block-diag embedding ----
    x2 = x_ref[0]                                    # (N, I*M*M)
    V = jnp.dot(x2, w_ref[...], preferred_element_type=f32)
    V = V + cen_ref[...]                             # (N, OP) votes + receptive centers

    a_in = a_ref[0]                                  # (N, 1) input activations
    beta_u = bu_ref[...]                             # (1, O)
    beta_a = ba_ref[...]                             # (1, O)

    N = V.shape[0]
    eps = f32(1e-8)
    ln2pi = f32(math.log(2.0 * math.pi))
    lam = f32(1e-2)                                  # fixed inverse temperature

    R = jnp.full((N, O), 1.0 / O, dtype=f32)
    mu = jnp.zeros((1, OP), dtype=f32)
    a_out = jnp.zeros((1, O), dtype=f32)

    for _ in range(routing_iters):                   # static, unrolled
        # ---------------- M-step ----------------
        Ra = R * a_in                                                       # (N, O)
        Rsum_o = jnp.sum(Ra, axis=0, keepdims=True) + eps                   # (1, O)  O-space reduce
        inv_Rsum_o = 1.0 / Rsum_o                                           # O divides only
        Ra_e = jnp.dot(Ra, E_exp, preferred_element_type=f32)               # (N, OP)
        inv_Rsum_e = jnp.dot(inv_Rsum_o, E_exp, preferred_element_type=f32)  # (1, OP)
        mu = jnp.sum(Ra_e * V, axis=0, keepdims=True) * inv_Rsum_e          # (1, OP)
        diff = V - mu                                                       # (N, OP)
        d2 = diff * diff
        sig2 = jnp.sum(Ra_e * d2, axis=0, keepdims=True) * inv_Rsum_e + eps  # (1, OP)
        log_sig2 = jnp.log(sig2)
        inv_sig2 = 1.0 / sig2                                               # once, on the (1,OP) row
        logsig2_o = jnp.dot(log_sig2, E_red, preferred_element_type=f32)    # (1, O)
        # cost_o = sum_p (beta_u + 0.5*log sig2) * Rsum  (Rsum constant over p)
        cost_o = Rsum_o * (P * beta_u + 0.5 * logsig2_o)                    # (1, O)
        a_out = 1.0 / (1.0 + jnp.exp(-lam * (beta_a - cost_o)))             # (1, O)
        # ---------------- E-step ----------------
        # ln_p = -0.5 * sum_p (d2/sig2 + log sig2 + ln 2pi); the log terms are
        # folded into the already-reduced (1, O) quantities.
        ln_p = -0.5 * (jnp.dot(d2 * inv_sig2, E_red, preferred_element_type=f32)
                       + logsig2_o + P * ln2pi)                             # (N, O)
        logits = ln_p + jnp.log(a_out + eps)                                # (N, O)
        m = jnp.max(logits, axis=1, keepdims=True)
        e = jnp.exp(logits - m)
        inv_den = 1.0 / (jnp.sum(e, axis=1, keepdims=True) + eps)           # (N, 1)
        R = e * inv_den

    mu_ref[0] = mu
    # lane-dense store: place a_out[o] at lane o of a 128-multiple-wide row
    act_ref[0] = jnp.dot(a_out, E_pad, preferred_element_type=f32)


@functools.partial(jax.jit, static_argnums=(6,))
def fccaps_matrix_forward(x, a, W_param, beta_u, beta_a, centers, routing_iters):
    B, H, Wd, I, M, _ = x.shape
    O = W_param.shape[4]
    HW = H * Wd
    N = HW * I
    MM = M * M
    P = MM
    OP = O * P
    IMM = I * MM
    LP = max(128, ((O + 127) // 128) * 128)          # lane-padded activation width

    f32 = jnp.float32
    x = x.astype(f32)

    # --- glue: block-diagonal embedding so the vote einsum becomes ONE dense matmul ---
    # Xn2[b, hw*I+i, j*MM + a*M + k] = delta(i,j) * x[b,hw,i,a,k]
    x_r = x.reshape(B, HW, I, MM)
    Xn2 = jnp.einsum('bnim,ij->bnijm', x_r, jnp.eye(I, dtype=f32)).reshape(B, N, IMM)

    # Wg2[i*MM + a*M + k, o*MM + A*M + c] = delta(a,A) * W[i,o,k,c]
    W_ = W_param.reshape(I, O, M, M).astype(f32)
    Wg2 = jnp.einsum('aA,iobc->iaboAc', jnp.eye(M, dtype=f32), W_).reshape(IMM, OP)

    # receptive centers broadcast over inCaps and outCaps, flattened to (N, O*P)
    cen = centers.reshape(HW, MM).astype(f32)
    cen_v = jnp.broadcast_to(cen[:, None, None, :], (HW, I, O, MM)).reshape(N, OP)

    a_in = a.reshape(B, N, 1).astype(f32)
    bu2 = beta_u.reshape(1, O).astype(f32)
    ba2 = beta_a.reshape(1, O).astype(f32)

    kernel = functools.partial(_fccaps_em_kernel, routing_iters=routing_iters,
                               out_caps=O, pose_dim=P)

    mu_out, act_out = pl.pallas_call(
        kernel,
        grid=(B,),
        in_specs=[
            pl.BlockSpec((1, N, IMM), lambda b: (b, 0, 0)),   # Xn2 (per-batch)
            pl.BlockSpec((IMM, OP), lambda b: (0, 0)),        # Wg2
            pl.BlockSpec((N, OP), lambda b: (0, 0)),          # centers
            pl.BlockSpec((1, N, 1), lambda b: (b, 0, 0)),     # a_in (per-batch)
            pl.BlockSpec((1, O), lambda b: (0, 0)),           # Beta_u
            pl.BlockSpec((1, O), lambda b: (0, 0)),           # Beta_a
        ],
        out_specs=(
            pl.BlockSpec((1, 1, OP), lambda b: (b, 0, 0)),    # pose (128-lane dense)
            pl.BlockSpec((1, 1, LP), lambda b: (b, 0, 0)),    # activation (lane-padded)
        ),
        out_shape=(
            jax.ShapeDtypeStruct((B, 1, OP), jnp.float32),
            jax.ShapeDtypeStruct((B, 1, LP), jnp.float32),
        ),
        compiler_params=pltpu.CompilerParams(dimension_semantics=("parallel",)),
    )(Xn2, Wg2, cen_v, a_in, bu2, ba2)

    pose = mu_out.reshape(B, O, M, M)   # (x.size(0), outCaps, *M_size)
    act = act_out[:, 0, :O]             # slice off lane padding
    return pose, act


def reference_forward(x, a, W_param, beta_u, beta_a, centers, routing_iters):
    """Pure-JAX mirror of the PyTorch forward + canonical EM routing."""
    B, H, Wd, I, M, _ = x.shape
    O = W_param.shape[4]
    P = M * M
    N = H * Wd * I
    x = x.astype(jnp.float32)

    W_ = W_param.reshape(I, O, M, M).astype(jnp.float32)
    # x.unsqueeze(4) @ W   (n=batch, a=pose row, k=contraction, c=pose col)
    V = jnp.einsum('nhwiak,iokc->nhwioac', x, W_)
    V = V + centers[None, :, :, None, None, :, :]             # + receptive_centers
    Vf = V.reshape(B, N, O, P)
    af = a.reshape(B, N).astype(jnp.float32)

    eps = 1e-8
    ln2pi = math.log(2.0 * math.pi)
    lam = 1e-2
    R = jnp.full((B, N, O), 1.0 / O, dtype=jnp.float32)
    bu = beta_u.reshape(1, 1, O, 1).astype(jnp.float32)
    ba = beta_a.reshape(1, 1, O).astype(jnp.float32)
    mu = None
    a_out = None
    for _ in range(routing_iters):
        Ra = R * af[:, :, None]
        Rsum = jnp.sum(Ra, axis=1, keepdims=True) + eps                       # (B,1,O)
        mu = jnp.sum(Ra[..., None] * Vf, axis=1, keepdims=True) / Rsum[..., None]
        diff = Vf - mu
        sig2 = jnp.sum(Ra[..., None] * diff * diff, axis=1, keepdims=True) / Rsum[..., None] + eps
        log_sig2 = jnp.log(sig2)
        cost = (bu + 0.5 * log_sig2) * Rsum[..., None]
        cost_o = jnp.sum(cost, axis=-1)                                       # (B,1,O)
        a_out = 1.0 / (1.0 + jnp.exp(-lam * (ba - cost_o)))
        q = diff * diff / sig2 + log_sig2 + ln2pi
        ln_p = -0.5 * jnp.sum(q, axis=-1)                                     # (B,N,O)
        logits = ln_p + jnp.log(a_out + eps)
        m = jnp.max(logits, axis=-1, keepdims=True)
        e = jnp.exp(logits - m)
        R = e / (jnp.sum(e, axis=-1, keepdims=True) + eps)

    pose = mu.reshape(B, O, M, M)
    act = a_out.reshape(B, O)
    return pose, act


if __name__ == "__main__":
    # small shapes consistent with the module
    B, H, Wd, inCaps, outCaps, M = 2, 4, 4, 4, 8, 4
    routing_iterations = 3

    key = jax.random.PRNGKey(0)
    k1, k2, k3, k4, k5 = jax.random.split(key, 5)

    # parameters (deterministic, shapes from __init__)
    W_param = jax.random.normal(k1, (1, 1, 1, inCaps, outCaps, M, M), jnp.float32)
    beta_a = jax.random.uniform(k2, (1, outCaps), jnp.float32)
    beta_u = jax.random.uniform(k3, (1, outCaps, 1), jnp.float32)

    # receptive_centers buffer: coordinate-addition style (H, W, M, M)
    centers = jnp.zeros((H, Wd, M, M), jnp.float32)
    xs = (jnp.arange(Wd, dtype=jnp.float32) + 0.5) / Wd
    ys = (jnp.arange(H, dtype=jnp.float32) + 0.5) / H
    centers = centers.at[:, :, 0, M - 1].set(jnp.broadcast_to(xs[None, :], (H, Wd)))
    centers = centers.at[:, :, 1, M - 1].set(jnp.broadcast_to(ys[:, None], (H, Wd)))

    # inputs
    x = jax.random.normal(k4, (B, H, Wd, inCaps, M, M), jnp.float32) * 0.5
    a = jax.random.uniform(k5, (B, H, Wd, inCaps), jnp.float32)

    pose, act = fccaps_matrix_forward(x, a, W_param, beta_u, beta_a, centers,
                                      routing_iterations)
    jax.block_until_ready((pose, act))

    pose_ref, act_ref = reference_forward(x, a, W_param, beta_u, beta_a, centers,
                                          routing_iterations)
    assert pose.shape == (B, outCaps, M, M) and act.shape == (B, outCaps)
    assert np.allclose(np.asarray(pose), np.asarray(pose_ref), rtol=1e-3, atol=1e-3)
    assert np.allclose(np.asarray(act), np.asarray(act_ref), rtol=1e-3, atol=1e-3)
    print("KERNEL_OK")
</pallas_src>

<mosaic_0001>
module attributes {stable_mosaic.version = 11 : i64} {
  func.func @_fccaps_em_kernel(%arg0: i32, %arg1: memref<1x64x64xf32, #tpu.memory_space<vmem>>, %arg2: memref<64x128xf32, #tpu.memory_space<vmem>>, %arg3: memref<64x128xf32, #tpu.memory_space<vmem>>, %arg4: memref<1x64x1xf32, #tpu.memory_space<vmem>>, %arg5: memref<1x8xf32, #tpu.memory_space<vmem>>, %arg6: memref<1x8xf32, #tpu.memory_space<vmem>>, %arg7: memref<1x1x128xf32, #tpu.memory_space<vmem>>, %arg8: memref<1x1x128xf32, #tpu.memory_space<vmem>>) attributes {dimension_semantics = [#tpu.dimension_semantics<parallel>], iteration_bounds = array<i64: 2>, scalar_prefetch = 0 : i64, scratch_operands = 0 : i64, tpu.core_type = #tpu.core_type<tc>, window_params = [{transform_indices = @transform_0, window_bounds = array<i64: 1, 64, 64>}, {pipeline_mode = #tpu.pipeline_mode<synchronous>, transform_indices = @transform_1, window_bounds = array<i64: 64, 128>}, {pipeline_mode = #tpu.pipeline_mode<synchronous>, transform_indices = @transform_2, window_bounds = array<i64: 64, 128>}, {transform_indices = @transform_3, window_bounds = array<i64: 1, 64, 1>}, {pipeline_mode = #tpu.pipeline_mode<synchronous>, transform_indices = @transform_4, window_bounds = array<i64: 1, 8>}, {pipeline_mode = #tpu.pipeline_mode<synchronous>, transform_indices = @transform_5, window_bounds = array<i64: 1, 8>}, {transform_indices = @transform_6, window_bounds = array<i64: 1, 1, 128>}, {transform_indices = @transform_7, window_bounds = array<i64: 1, 1, 128>}]} {
    %0 = tpu.iota {dimensions = array<i32: 0>} : vector<8x128xi32>
    %1 = tpu.iota {dimensions = array<i32: 1>} : vector<8x128xi32>
    %c16_i32 = arith.constant 16 : i32
    %2 = vector.broadcast %c16_i32 : i32 to vector<8x128xi32>
    %3 = arith.muli %0, %2 : vector<8x128xi32>
    %4 = arith.cmpi sge, %1, %3 : vector<8x128xi32>
    %c1_i32 = arith.constant 1 : i32
    %5 = vector.broadcast %c1_i32 : i32 to vector<8x128xi32>
    %6 = arith.addi %0, %5 : vector<8x128xi32>
    %c16_i32_0 = arith.constant 16 : i32
    %7 = vector.broadcast %c16_i32_0 : i32 to vector<8x128xi32>
    %8 = arith.muli %6, %7 : vector<8x128xi32>
    %9 = arith.cmpi slt, %1, %8 : vector<8x128xi32>
    %10 = arith.andi %4, %9 : vector<8x128xi1>
    %11 = arith.extui %10 : vector<8x128xi1> to vector<8x128xi32>
    %12 = arith.sitofp %11 : vector<8x128xi32> to vector<8x128xf32>
    %13 = tpu.iota {dimensions = array<i32: 0>} : vector<128x8xi32>
    %14 = tpu.iota {dimensions = array<i32: 1>} : vector<128x8xi32>
    %c16_i32_1 = arith.constant 16 : i32
    %15 = vector.broadcast %c16_i32_1 : i32 to vector<128x8xi32>
    %16 = arith.muli %14, %15 : vector<128x8xi32>
    %17 = arith.cmpi sge, %13, %16 : vector<128x8xi32>
    %c1_i32_2 = arith.constant 1 : i32
    %18 = vector.broadcast %c1_i32_2 : i32 to vector<128x8xi32>
    %19 = arith.addi %14, %18 : vector<128x8xi32>
    %c16_i32_3 = arith.constant 16 : i32
    %20 = vector.broadcast %c16_i32_3 : i32 to vector<128x8xi32>
    %21 = arith.muli %19, %20 : vector<128x8xi32>
    %22 = arith.cmpi slt, %13, %21 : vector<128x8xi32>
    %23 = arith.andi %17, %22 : vector<128x8xi1>
    %24 = arith.extui %23 : vector<128x8xi1> to vector<128x8xi32>
    %25 = arith.sitofp %24 : vector<128x8xi32> to vector<128x8xf32>
    %26 = tpu.iota {dimensions = array<i32: 0>} : vector<8x128xi32>
    %27 = tpu.iota {dimensions = array<i32: 1>} : vector<8x128xi32>
    %28 = arith.cmpi eq, %26, %27 : vector<8x128xi32>
    %29 = arith.extui %28 : vector<8x128xi1> to vector<8x128xi32>
    %30 = arith.sitofp %29 : vector<8x128xi32> to vector<8x128xf32>
    %c0 = arith.constant 0 : index
    %c0_4 = arith.constant 0 : index
    %c0_5 = arith.constant 0 : index
    %31 = vector.load %arg1[%c0, %c0_4, %c0_5] : memref<1x64x64xf32, #tpu.memory_space<vmem>>, vector<1x64x64xf32>
    %32 = vector.shape_cast %31 : vector<1x64x64xf32> to vector<64x64xf32>
    %c0_6 = arith.constant 0 : index
    %c0_7 = arith.constant 0 : index
    %33 = vector.load %arg2[%c0_6, %c0_7] : memref<64x128xf32, #tpu.memory_space<vmem>>, vector<64x128xf32>
    %cst = arith.constant dense<0.000000e+00> : vector<64x128xf32>
    %34 = tpu.matmul %32, %33, %cst {dimension_numbers = #tpu.dot_dimension_numbers<[1], [0], [0], [1], [0, 0, 1, 1], [], []>} : vector<64x64xf32>, vector<64x128xf32>, vector<64x128xf32> -> vector<64x128xf32>
    %c0_8 = arith.constant 0 : index
    %c0_9 = arith.constant 0 : index
    %35 = vector.load %arg3[%c0_8, %c0_9] : memref<64x128xf32, #tpu.memory_space<vmem>>, vector<64x128xf32>
    %36 = arith.addf %34, %35 : vector<64x128xf32>
    %c0_10 = arith.constant 0 : index
    %c0_11 = arith.constant 0 : index
    %c0_12 = arith.constant 0 : index
    %37 = vector.load %arg4[%c0_10, %c0_11, %c0_12] : memref<1x64x1xf32, #tpu.memory_space<vmem>>, vector<1x64x1xf32>
    %38 = vector.shape_cast %37 : vector<1x64x1xf32> to vector<64x1xf32>
    %c0_13 = arith.constant 0 : index
    %c0_14 = arith.constant 0 : index
    %39 = vector.load %arg5[%c0_13, %c0_14] : memref<1x8xf32, #tpu.memory_space<vmem>>, vector<1x8xf32>
    %c0_15 = arith.constant 0 : index
    %c0_16 = arith.constant 0 : index
    %40 = vector.load %arg6[%c0_15, %c0_16] : memref<1x8xf32, #tpu.memory_space<vmem>>, vector<1x8xf32>
    %cst_17 = arith.constant 1.250000e-01 : f32
    %41 = vector.broadcast %cst_17 : f32 to vector<64x8xf32>
    %42 = vector.broadcast %38 : vector<64x1xf32> to vector<64x8xf32>
    %43 = arith.mulf %41, %42 : vector<64x8xf32>
    %cst_18 = arith.constant dense<0.000000e+00> : vector<8xf32>
    %44 = vector.multi_reduction <add>, %43, %cst_18 [0] : vector<64x8xf32> to vector<8xf32>
    %45 = vector.shape_cast %44 : vector<8xf32> to vector<1x8xf32>
    %cst_19 = arith.constant 9.99999993E-9 : f32
    %46 = vector.broadcast %cst_19 : f32 to vector<1x8xf32>
    %47 = arith.addf %45, %46 : vector<1x8xf32>
    %cst_20 = arith.constant 1.000000e+00 : f32
    %48 = vector.broadcast %cst_20 : f32 to vector<1x8xf32>
    %49 = arith.divf %48, %47 : vector<1x8xf32>
    %cst_21 = arith.constant dense<0.000000e+00> : vector<64x128xf32>
    %50 = tpu.matmul %43, %12, %cst_21 {dimension_numbers = #tpu.dot_dimension_numbers<[1], [0], [0], [1], [0, 0, 1, 1], [], []>} : vector<64x8xf32>, vector<8x128xf32>, vector<64x128xf32> -> vector<64x128xf32>
    %cst_22 = arith.constant dense<0.000000e+00> : vector<1x128xf32>
    %51 = tpu.matmul %49, %12, %cst_22 {dimension_numbers = #tpu.dot_dimension_numbers<[1], [0], [0], [1], [0, 0, 1, 1], [], []>} : vector<1x8xf32>, vector<8x128xf32>, vector<1x128xf32> -> vector<1x128xf32>
    %52 = arith.mulf %50, %36 : vector<64x128xf32>
    %cst_23 = arith.constant dense<0.000000e+00> : vector<128xf32>
    %53 = vector.multi_reduction <add>, %52, %cst_23 [0] : vector<64x128xf32> to vector<128xf32>
    %54 = vector.shape_cast %53 : vector<128xf32> to vector<1x128xf32>
    %55 = arith.mulf %54, %51 : vector<1x128xf32>
    %56 = vector.broadcast %55 : vector<1x128xf32> to vector<64x128xf32>
    %57 = arith.subf %36, %56 : vector<64x128xf32>
    %58 = arith.mulf %57, %57 : vector<64x128xf32>
    %59 = arith.mulf %50, %58 : vector<64x128xf32>
    %cst_24 = arith.constant dense<0.000000e+00> : vector<128xf32>
    %60 = vector.multi_reduction <add>, %59, %cst_24 [0] : vector<64x128xf32> to vector<128xf32>
    %61 = vector.shape_cast %60 : vector<128xf32> to vector<1x128xf32>
    %62 = arith.mulf %61, %51 : vector<1x128xf32>
    %cst_25 = arith.constant 9.99999993E-9 : f32
    %63 = vector.broadcast %cst_25 : f32 to vector<1x128xf32>
    %64 = arith.addf %62, %63 : vector<1x128xf32>
    %65 = math.log %64 : vector<1x128xf32>
    %cst_26 = arith.constant 1.000000e+00 : f32
    %66 = vector.broadcast %cst_26 : f32 to vector<1x128xf32>
    %67 = arith.divf %66, %64 : vector<1x128xf32>
    %cst_27 = arith.constant dense<0.000000e+00> : vector<1x8xf32>
    %68 = tpu.matmul %65, %25, %cst_27 {dimension_numbers = #tpu.dot_dimension_numbers<[1], [0], [0], [1], [0, 0, 1, 1], [], []>} : vector<1x128xf32>, vector<128x8xf32>, vector<1x8xf32> -> vector<1x8xf32>
    %cst_28 = arith.constant 1.600000e+01 : f32
    %69 = vector.broadcast %cst_28 : f32 to vector<1x8xf32>
    %70 = arith.mulf %69, %39 : vector<1x8xf32>
    %cst_29 = arith.constant 5.000000e-01 : f32
    %71 = vector.broadcast %cst_29 : f32 to vector<1x8xf32>
    %72 = arith.mulf %71, %68 : vector<1x8xf32>
    %73 = arith.addf %70, %72 : vector<1x8xf32>
    %74 = arith.mulf %47, %73 : vector<1x8xf32>
    %cst_30 = arith.constant 0.000000e+00 : f32
    %cst_31 = arith.constant 0.00999999977 : f32
    %75 = arith.subf %cst_30, %cst_31 : f32
    %76 = arith.subf %40, %74 : vector<1x8xf32>
    %77 = vector.broadcast %75 : f32 to vector<1x8xf32>
    %78 = arith.mulf %77, %76 : vector<1x8xf32>
    %79 = math.exp %78 : vector<1x8xf32>
    %cst_32 = arith.constant 1.000000e+00 : f32
    %80 = vector.broadcast %cst_32 : f32 to vector<1x8xf32>
    %81 = arith.addf %80, %79 : vector<1x8xf32>
    %cst_33 = arith.constant 1.000000e+00 : f32
    %82 = vector.broadcast %cst_33 : f32 to vector<1x8xf32>
    %83 = arith.divf %82, %81 : vector<1x8xf32>
    %84 = vector.broadcast %67 : vector<1x128xf32> to vector<64x128xf32>
    %85 = arith.mulf %58, %84 : vector<64x128xf32>
    %cst_34 = arith.constant dense<0.000000e+00> : vector<64x8xf32>
    %86 = tpu.matmul %85, %25, %cst_34 {dimension_numbers = #tpu.dot_dimension_numbers<[1], [0], [0], [1], [0, 0, 1, 1], [], []>} : vector<64x128xf32>, vector<128x8xf32>, vector<64x8xf32> -> vector<64x8xf32>
    %87 = vector.broadcast %68 : vector<1x8xf32> to vector<64x8xf32>
    %88 = arith.addf %86, %87 : vector<64x8xf32>
    %cst_35 = arith.constant 1.600000e+01 : f32
    %cst_36 = arith.constant 1.83787704 : f32
    %89 = arith.mulf %cst_35, %cst_36 : f32
    %90 = vector.broadcast %89 : f32 to vector<64x8xf32>
    %91 = arith.addf %88, %90 : vector<64x8xf32>
    %cst_37 = arith.constant -5.000000e-01 : f32
    %92 = vector.broadcast %cst_37 : f32 to vector<64x8xf32>
    %93 = arith.mulf %92, %91 : vector<64x8xf32>
    %cst_38 = arith.constant 9.99999993E-9 : f32
    %94 = vector.broadcast %cst_38 : f32 to vector<1x8xf32>
    %95 = arith.addf %83, %94 : vector<1x8xf32>
    %96 = math.log %95 : vector<1x8xf32>
    %97 = vector.broadcast %96 : vector<1x8xf32> to vector<64x8xf32>
    %98 = arith.addf %93, %97 : vector<64x8xf32>
    %cst_39 = arith.constant dense<0xFF800000> : vector<64xf32>
    %99 = vector.multi_reduction <maximumf>, %98, %cst_39 [1] : vector<64x8xf32> to vector<64xf32>
    %100 = vector.shape_cast %99 : vector<64xf32> to vector<64x1xf32>
    %101 = vector.broadcast %100 : vector<64x1xf32> to vector<64x8xf32>
    %102 = arith.subf %98, %101 : vector<64x8xf32>
    %103 = math.exp %102 : vector<64x8xf32>
    %cst_40 = arith.constant dense<0.000000e+00> : vector<64xf32>
    %104 = vector.multi_reduction <add>, %103, %cst_40 [1] : vector<64x8xf32> to vector<64xf32>
    %105 = vector.shape_cast %104 : vector<64xf32> to vector<64x1xf32>
    %cst_41 = arith.constant 9.99999993E-9 : f32
    %106 = vector.broadcast %cst_41 : f32 to vector<64x1xf32>
    %107 = arith.addf %105, %106 : vector<64x1xf32>
    %cst_42 = arith.constant 1.000000e+00 : f32
    %108 = vector.broadcast %cst_42 : f32 to vector<64x1xf32>
    %109 = arith.divf %108, %107 : vector<64x1xf32>
    %110 = vector.broadcast %109 : vector<64x1xf32> to vector<64x8xf32>
    %111 = arith.mulf %103, %110 : vector<64x8xf32>
    %112 = vector.broadcast %38 : vector<64x1xf32> to vector<64x8xf32>
    %113 = arith.mulf %111, %112 : vector<64x8xf32>
    %cst_43 = arith.constant dense<0.000000e+00> : vector<8xf32>
    %114 = vector.multi_reduction <add>, %113, %cst_43 [0] : vector<64x8xf32> to vector<8xf32>
    %115 = vector.shape_cast %114 : vector<8xf32> to vector<1x8xf32>
    %cst_44 = arith.constant 9.99999993E-9 : f32
    %116 = vector.broadcast %cst_44 : f32 to vector<1x8xf32>
    %117 = arith.addf %115, %116 : vector<1x8xf32>
    %cst_45 = arith.constant 1.000000e+00 : f32
    %118 = vector.broadcast %cst_45 : f32 to vector<1x8xf32>
    %119 = arith.divf %118, %117 : vector<1x8xf32>
    %cst_46 = arith.constant dense<0.000000e+00> : vector<64x128xf32>
    %120 = tpu.matmul %113, %12, %cst_46 {dimension_numbers = #tpu.dot_dimension_numbers<[1], [0], [0], [1], [0, 0, 1, 1], [], []>} : vector<64x8xf32>, vector<8x128xf32>, vector<64x128xf32> -> vector<64x128xf32>
    %cst_47 = arith.constant dense<0.000000e+00> : vector<1x128xf32>
    %121 = tpu.matmul %119, %12, %cst_47 {dimension_numbers = #tpu.dot_dimension_numbers<[1], [0], [0], [1], [0, 0, 1, 1], [], []>} : vector<1x8xf32>, vector<8x128xf32>, vector<1x128xf32> -> vector<1x128xf32>
    %122 = arith.mulf %120, %36 : vector<64x128xf32>
    %cst_48 = arith.constant dense<0.000000e+00> : vector<128xf32>
    %123 = vector.multi_reduction <add>, %122, %cst_48 [0] : vector<64x128xf32> to vector<128xf32>
    %124 = vector.shape_cast %123 : vector<128xf32> to vector<1x128xf32>
    %125 = arith.mulf %124, %121 : vector<1x128xf32>
    %126 = vector.broadcast %125 : vector<1x128xf32> to vector<64x128xf32>
    %127 = arith.subf %36, %126 : vector<64x128xf32>
    %128 = arith.mulf %127, %127 : vector<64x128xf32>
    %129 = arith.mulf %120, %128 : vector<64x128xf32>
    %cst_49 = arith.constant dense<0.000000e+00> : vector<128xf32>
    %130 = vector.multi_reduction <add>, %129, %cst_49 [0] : vector<64x128xf32> to vector<128xf32>
    %131 = vector.shape_cast %130 : vector<128xf32> to vector<1x128xf32>
    %132 = arith.mulf %131, %121 : vector<1x128xf32>
    %cst_50 = arith.constant 9.99999993E-9 : f32
    %133 = vector.broadcast %cst_50 : f32 to vector<1x128xf32>
    %134 = arith.addf %132, %133 : vector<1x128xf32>
    %135 = math.log %134 : vector<1x128xf32>
    %cst_51 = arith.constant 1.000000e+00 : f32
    %136 = vector.broadcast %cst_51 : f32 to vector<1x128xf32>
    %137 = arith.divf %136, %134 : vector<1x128xf32>
    %cst_52 = arith.constant dense<0.000000e+00> : vector<1x8xf32>
    %138 = tpu.matmul %135, %25, %cst_52 {dimension_numbers = #tpu.dot_dimension_numbers<[1], [0], [0], [1], [0, 0, 1, 1], [], []>} : vector<1x128xf32>, vector<128x8xf32>, vector<1x8xf32> -> vector<1x8xf32>
    %cst_53 = arith.constant 1.600000e+01 : f32
    %139 = vector.broadcast %cst_53 : f32 to vector<1x8xf32>
    %140 = arith.mulf %139, %39 : vector<1x8xf32>
    %cst_54 = arith.constant 5.000000e-01 : f32
    %141 = vector.broadcast %cst_54 : f32 to vector<1x8xf32>
    %142 = arith.mulf %141, %138 : vector<1x8xf32>
    %143 = arith.addf %140, %142 : vector<1x8xf32>
    %144 = arith.mulf %117, %143 : vector<1x8xf32>
    %cst_55 = arith.constant 0.000000e+00 : f32
    %cst_56 = arith.constant 0.00999999977 : f32
    %145 = arith.subf %cst_55, %cst_56 : f32
    %146 = arith.subf %40, %144 : vector<1x8xf32>
    %147 = vector.broadcast %145 : f32 to vector<1x8xf32>
    %148 = arith.mulf %147, %146 : vector<1x8xf32>
    %149 = math.exp %148 : vector<1x8xf32>
    %cst_57 = arith.constant 1.000000e+00 : f32
    %150 = vector.broadcast %cst_57 : f32 to vector<1x8xf32>
    %151 = arith.addf %150, %149 : vector<1x8xf32>
    %cst_58 = arith.constant 1.000000e+00 : f32
    %152 = vector.broadcast %cst_58 : f32 to vector<1x8xf32>
    %153 = arith.divf %152, %151 : vector<1x8xf32>
    %154 = vector.broadcast %137 : vector<1x128xf32> to vector<64x128xf32>
    %155 = arith.mulf %128, %154 : vector<64x128xf32>
    %cst_59 = arith.constant dense<0.000000e+00> : vector<64x8xf32>
    %156 = tpu.matmul %155, %25, %cst_59 {dimension_numbers = #tpu.dot_dimension_numbers<[1], [0], [0], [1], [0, 0, 1, 1], [], []>} : vector<64x128xf32>, vector<128x8xf32>, vector<64x8xf32> -> vector<64x8xf32>
    %157 = vector.broadcast %138 : vector<1x8xf32> to vector<64x8xf32>
    %158 = arith.addf %156, %157 : vector<64x8xf32>
    %cst_60 = arith.constant 1.600000e+01 : f32
    %cst_61 = arith.constant 1.83787704 : f32
    %159 = arith.mulf %cst_60, %cst_61 : f32
    %160 = vector.broadcast %159 : f32 to vector<64x8xf32>
    %161 = arith.addf %158, %160 : vector<64x8xf32>
    %cst_62 = arith.constant -5.000000e-01 : f32
    %162 = vector.broadcast %cst_62 : f32 to vector<64x8xf32>
    %163 = arith.mulf %162, %161 : vector<64x8xf32>
    %cst_63 = arith.constant 9.99999993E-9 : f32
    %164 = vector.broadcast %cst_63 : f32 to vector<1x8xf32>
    %165 = arith.addf %153, %164 : vector<1x8xf32>
    %166 = math.log %165 : vector<1x8xf32>
    %167 = vector.broadcast %166 : vector<1x8xf32> to vector<64x8xf32>
    %168 = arith.addf %163, %167 : vector<64x8xf32>
    %cst_64 = arith.constant dense<0xFF800000> : vector<64xf32>
    %169 = vector.multi_reduction <maximumf>, %168, %cst_64 [1] : vector<64x8xf32> to vector<64xf32>
    %170 = vector.shape_cast %169 : vector<64xf32> to vector<64x1xf32>
    %171 = vector.broadcast %170 : vector<64x1xf32> to vector<64x8xf32>
    %172 = arith.subf %168, %171 : vector<64x8xf32>
    %173 = math.exp %172 : vector<64x8xf32>
    %cst_65 = arith.constant dense<0.000000e+00> : vector<64xf32>
    %174 = vector.multi_reduction <add>, %173, %cst_65 [1] : vector<64x8xf32> to vector<64xf32>
    %175 = vector.shape_cast %174 : vector<64xf32> to vector<64x1xf32>
    %cst_66 = arith.constant 9.99999993E-9 : f32
    %176 = vector.broadcast %cst_66 : f32 to vector<64x1xf32>
    %177 = arith.addf %175, %176 : vector<64x1xf32>
    %cst_67 = arith.constant 1.000000e+00 : f32
    %178 = vector.broadcast %cst_67 : f32 to vector<64x1xf32>
    %179 = arith.divf %178, %177 : vector<64x1xf32>
    %180 = vector.broadcast %179 : vector<64x1xf32> to vector<64x8xf32>
    %181 = arith.mulf %173, %180 : vector<64x8xf32>
    %182 = vector.broadcast %38 : vector<64x1xf32> to vector<64x8xf32>
    %183 = arith.mulf %181, %182 : vector<64x8xf32>
    %cst_68 = arith.constant dense<0.000000e+00> : vector<8xf32>
    %184 = vector.multi_reduction <add>, %183, %cst_68 [0] : vector<64x8xf32> to vector<8xf32>
    %185 = vector.shape_cast %184 : vector<8xf32> to vector<1x8xf32>
    %cst_69 = arith.constant 9.99999993E-9 : f32
    %186 = vector.broadcast %cst_69 : f32 to vector<1x8xf32>
    %187 = arith.addf %185, %186 : vector<1x8xf32>
    %cst_70 = arith.constant 1.000000e+00 : f32
    %188 = vector.broadcast %cst_70 : f32 to vector<1x8xf32>
    %189 = arith.divf %188, %187 : vector<1x8xf32>
    %cst_71 = arith.constant dense<0.000000e+00> : vector<64x128xf32>
    %190 = tpu.matmul %183, %12, %cst_71 {dimension_numbers = #tpu.dot_dimension_numbers<[1], [0], [0], [1], [0, 0, 1, 1], [], []>} : vector<64x8xf32>, vector<8x128xf32>, vector<64x128xf32> -> vector<64x128xf32>
    %cst_72 = arith.constant dense<0.000000e+00> : vector<1x128xf32>
    %191 = tpu.matmul %189, %12, %cst_72 {dimension_numbers = #tpu.dot_dimension_numbers<[1], [0], [0], [1], [0, 0, 1, 1], [], []>} : vector<1x8xf32>, vector<8x128xf32>, vector<1x128xf32> -> vector<1x128xf32>
    %192 = arith.mulf %190, %36 : vector<64x128xf32>
    %cst_73 = arith.constant dense<0.000000e+00> : vector<128xf32>
    %193 = vector.multi_reduction <add>, %192, %cst_73 [0] : vector<64x128xf32> to vector<128xf32>
    %194 = vector.shape_cast %193 : vector<128xf32> to vector<1x128xf32>
    %195 = arith.mulf %194, %191 : vector<1x128xf32>
    %196 = vector.broadcast %195 : vector<1x128xf32> to vector<64x128xf32>
    %197 = arith.subf %36, %196 : vector<64x128xf32>
    %198 = arith.mulf %197, %197 : vector<64x128xf32>
    %199 = arith.mulf %190, %198 : vector<64x128xf32>
    %cst_74 = arith.constant dense<0.000000e+00> : vector<128xf32>
    %200 = vector.multi_reduction <add>, %199, %cst_74 [0] : vector<64x128xf32> to vector<128xf32>
    %201 = vector.shape_cast %200 : vector<128xf32> to vector<1x128xf32>
    %202 = arith.mulf %201, %191 : vector<1x128xf32>
    %cst_75 = arith.constant 9.99999993E-9 : f32
    %203 = vector.broadcast %cst_75 : f32 to vector<1x128xf32>
    %204 = arith.addf %202, %203 : vector<1x128xf32>
    %205 = math.log %204 : vector<1x128xf32>
    %cst_76 = arith.constant dense<0.000000e+00> : vector<1x8xf32>
    %206 = tpu.matmul %205, %25, %cst_76 {dimension_numbers = #tpu.dot_dimension_numbers<[1], [0], [0], [1], [0, 0, 1, 1], [], []>} : vector<1x128xf32>, vector<128x8xf32>, vector<1x8xf32> -> vector<1x8xf32>
    %cst_77 = arith.constant 1.600000e+01 : f32
    %207 = vector.broadcast %cst_77 : f32 to vector<1x8xf32>
    %208 = arith.mulf %207, %39 : vector<1x8xf32>
    %cst_78 = arith.constant 5.000000e-01 : f32
    %209 = vector.broadcast %cst_78 : f32 to vector<1x8xf32>
    %210 = arith.mulf %209, %206 : vector<1x8xf32>
    %211 = arith.addf %208, %210 : vector<1x8xf32>
    %212 = arith.mulf %187, %211 : vector<1x8xf32>
    %cst_79 = arith.constant 0.000000e+00 : f32
    %cst_80 = arith.constant 0.00999999977 : f32
    %213 = arith.subf %cst_79, %cst_80 : f32
    %214 = arith.subf %40, %212 : vector<1x8xf32>
    %215 = vector.broadcast %213 : f32 to vector<1x8xf32>
    %216 = arith.mulf %215, %214 : vector<1x8xf32>
    %217 = math.exp %216 : vector<1x8xf32>
    %cst_81 = arith.constant 1.000000e+00 : f32
    %218 = vector.broadcast %cst_81 : f32 to vector<1x8xf32>
    %219 = arith.addf %218, %217 : vector<1x8xf32>
    %cst_82 = arith.constant 1.000000e+00 : f32
    %220 = vector.broadcast %cst_82 : f32 to vector<1x8xf32>
    %221 = arith.divf %220, %219 : vector<1x8xf32>
    %c0_83 = arith.constant 0 : index
    %c0_84 = arith.constant 0 : index
    %c0_85 = arith.constant 0 : index
    %222 = vector.load %arg7[%c0_83, %c0_84, %c0_85] : memref<1x1x128xf32, #tpu.memory_space<vmem>>, vector<1x1x128xf32>
    %223 = vector.shape_cast %222 : vector<1x1x128xf32> to vector<1x128xf32>
    %224 = vector.shape_cast %195 : vector<1x128xf32> to vector<1x1x128xf32>
    tpu.vector_store %arg7[%c0_83, %c0_84, %c0_85], %224 {strides = array<i32>} : memref<1x1x128xf32, #tpu.memory_space<vmem>>, vector<1x1x128xf32>,
    %cst_86 = arith.constant dense<0.000000e+00> : vector<1x128xf32>
    %225 = tpu.matmul %221, %30, %cst_86 {dimension_numbers = #tpu.dot_dimension_numbers<[1], [0], [0], [1], [0, 0, 1, 1], [], []>} : vector<1x8xf32>, vector<8x128xf32>, vector<1x128xf32> -> vector<1x128xf32>
    %c0_87 = arith.constant 0 : index
    %c0_88 = arith.constant 0 : index
    %c0_89 = arith.constant 0 : index
    %226 = vector.load %arg8[%c0_87, %c0_88, %c0_89] : memref<1x1x128xf32, #tpu.memory_space<vmem>>, vector<1x1x128xf32>
    %227 = vector.shape_cast %226 : vector<1x1x128xf32> to vector<1x128xf32>
    %228 = vector.shape_cast %225 : vector<1x128xf32> to vector<1x1x128xf32>
    tpu.vector_store %arg8[%c0_87, %c0_88, %c0_89], %228 {strides = array<i32>} : memref<1x1x128xf32, #tpu.memory_space<vmem>>, vector<1x1x128xf32>,
    return
  }
  func.func @transform_0(%arg0: i32) -> (i32, i32, i32) {
    %c0_i32 = arith.constant 0 : i32
    %c0_i32_0 = arith.constant 0 : i32
    %c0_i32_1 = arith.constant 0 : i32
    return %arg0, %c0_i32, %c0_i32_0 : i32, i32, i32
  }
  func.func @transform_1(%arg0: i32) -> (i32, i32) {
    %c0_i32 = arith.constant 0 : i32
    %c0_i32_0 = arith.constant 0 : i32
    %c0_i32_1 = arith.constant 0 : i32
    return %c0_i32, %c0_i32_0 : i32, i32
  }
  func.func @transform_2(%arg0: i32) -> (i32, i32) {
    %c0_i32 = arith.constant 0 : i32
    %c0_i32_0 = arith.constant 0 : i32
    %c0_i32_1 = arith.constant 0 : i32
    return %c0_i32, %c0_i32_0 : i32, i32
  }
  func.func @transform_3(%arg0: i32) -> (i32, i32, i32) {
    %c0_i32 = arith.constant 0 : i32
    %c0_i32_0 = arith.constant 0 : i32
    %c0_i32_1 = arith.constant 0 : i32
    return %arg0, %c0_i32, %c0_i32_0 : i32, i32, i32
  }
  func.func @transform_4(%arg0: i32) -> (i32, i32) {
    %c0_i32 = arith.constant 0 : i32
    %c0_i32_0 = arith.constant 0 : i32
    %c0_i32_1 = arith.constant 0 : i32
    return %c0_i32, %c0_i32_0 : i32, i32
  }
  func.func @transform_5(%arg0: i32) -> (i32, i32) {
    %c0_i32 = arith.constant 0 : i32
    %c0_i32_0 = arith.constant 0 : i32
    %c0_i32_1 = arith.constant 0 : i32
    return %c0_i32, %c0_i32_0 : i32, i32
  }
  func.func @transform_6(%arg0: i32) -> (i32, i32, i32) {
    %c0_i32 = arith.constant 0 : i32
    %c0_i32_0 = arith.constant 0 : i32
    %c0_i32_1 = arith.constant 0 : i32
    return %arg0, %c0_i32, %c0_i32_0 : i32, i32, i32
  }
  func.func @transform_7(%arg0: i32) -> (i32, i32, i32) {
    %c0_i32 = arith.constant 0 : i32
    %c0_i32_0 = arith.constant 0 : i32
    %c0_i32_1 = arith.constant 0 : i32
    return %arg0, %c0_i32, %c0_i32_0 : i32, i32, i32
  }
}

</mosaic_0001>

<llo_original>
// kernel: fccaps_matrix_forward.1
$region0: #{fccaps_matrix_forward.1}
  #allocation0 [shape = 'u32[]', space=smem, size = 0x4, offset = 0x4, fixed_abs, tag = 'smem constant byte address 0x4 - core index']
  #allocation1 [shape = 'u32[144,128]{1,0:T(1,128)}', space=vmem, size = 0x12000, scoped, tag = 'internal scratch']
  %s0 = inlined_call_operand.vmem [shape: f32[2,64,64], index: 0, kind: input, shape index: {}]
  %s1 = inlined_call_operand.vmem [shape: f32[64,128], index: 1, kind: input, shape index: {}]
  %s2 = inlined_call_operand.vmem [shape: f32[64,128], index: 2, kind: input, shape index: {}]
  %s3 = inlined_call_operand.vmem [shape: f32[2,64,1], index: 3, kind: input, shape index: {}]
  %s4 = inlined_call_operand.vmem [shape: f32[1,8], index: 4, kind: input, shape index: {}]
  %s5 = inlined_call_operand.vmem [shape: f32[1,8], index: 5, kind: input, shape index: {}]
  %s6 = inlined_call_operand.vmem [shape: f32[2,1,128], index: 6, kind: output, shape index: {0}]
  %s7 = inlined_call_operand.hbm [shape: f32[2,1,128], index: 7, kind: output, shape index: {1}]
  %8 = xla_tuple %s6, %s7
  %s9 = sld [smem:[#allocation0]]
  $region65: #{fccaps_matrix_forward.1} parent=0
    _
  %s11 = ssub.s32 1, %s9
  %s12 = scalar_select 0, %s11, %s9
  $region1: #{fccaps_matrix_forward.1} parent=0
    #allocation2 [shape = 'u8[1024]{0}', space=vmem, size = 0x400, scoped, tag = 'output window, operand 1']
    #allocation3 [shape = 's32[2]{0}', space=sflag, size = 0x8, scoped, tag = 'scoped memory for fccaps_matrix_forward.1']
    %13 = vsyncpa [#allocation3], 0
    %s14 = scalar_lea.sflag [#allocation3], 1
    %15 = vsyncpa %s14, 0
    loop: start=0, step=1, limit=4
    $region2: #{fccaps_matrix_forward.1} parent=1 // loop_pre_header
      _
    $region3: #{fccaps_matrix_forward.1} parent=1 // loop_header
      %s17 = sphi 0, %s21
      %p18 = scmp.ge.s32.totalorder %s17, 4
      %s27 = sphi 0, %s29
      %s30 = sphi 0, %s27
      %s31 = sphi 0, %s30
      %s47 = sphi 0, %s31
      %s51 = sphi 0, %s51
      %s53 = sphi 0, %s51
      %s54 = sphi 0, %s53
      %s68 = sphi 0, %s54
      %s72 = sphi 0, %s72
      %s74 = sphi 0, %s72
      %s75 = sphi 0, %s74
      %s89 = sphi 0, %s75
      %s95 = sphi 0, %s97
      %s98 = sphi 0, %s95
      %s99 = sphi 0, %s98
      %s115 = sphi 0, %s99
      %s119 = sphi 0, %s119
      %s121 = sphi 0, %s119
      %s122 = sphi 0, %s121
      %s136 = sphi 0, %s122
      %s140 = sphi 0, %s140
      %s142 = sphi 0, %s140
      %s143 = sphi 0, %s142
      %s157 = sphi 0, %s143
      %s163 = sphi 0, %s165
      %s166 = sphi 0, %s163
      %s167 = sphi 0, %s166
      %s183 = sphi 0, %s167
      %s189 = sphi 0, %s191
      %s192 = sphi 0, %s189
      %s193 = sphi 0, %s192
      %s209 = sphi 0, %s193
    $region4: #{fccaps_matrix_forward.1} parent=1 // loop_header_branch
      %20 = sbr.rel (%p18) target = $region8
    $region5: #{fccaps_matrix_forward.1} parent=1 // loop_body
      %s22 = ssub.s32 %s17, 1
      %s23 = ssub.s32 %s17, 2
      %s24 = sadd.s32 %s17, 1
      %s25 = ssub.s32 %s17, %s24
      %p26 = scmp.eq.s32.totalorder %s25, 0
      %s28 = sadd.s32 %s27, 1
      %s29 = scalar_select %p26, %s27, %s28
      %p32 = pneg %p26
      %p33 = scmp.eq.s32.totalorder %s17, 1
      %p34 = por %p32, %p33
      %p35 = scmp.ne.s32.totalorder %s27, %s30
      %p36 = scmp.eq.s32.totalorder %s17, 0
      %p37 = por %p35, %p36
      %p38 = scmp.ne.s32.totalorder %s27, %s30
      %p39 = scmp.eq.s32.totalorder %s22, 1
      %p40 = por %p38, %p39
      %p41 = scmp.ne.s32.totalorder %s30, %s31
      %p42 = scmp.eq.s32.totalorder %s22, 0
      %p43 = por %p41, %p42
      %p44 = scmp.ne.s32.totalorder %s30, %s31
      %p45 = scmp.eq.s32.totalorder %s23, 1
      %p46 = por %p44, %p45
      %p48 = scmp.ne.s32.totalorder %s31, %s47
      %p49 = scmp.eq.s32.totalorder %s23, 0
      %p50 = por %p48, %p49
      %s52 = sadd.s32 %s51, 1
      %p55 = scmp.eq.s32.totalorder %s17, 1
      %p56 = scmp.ne.s32.totalorder %s51, %s53
      %p57 = scmp.eq.s32.totalorder %s17, 0
      %p58 = por %p56, %p57
      %p59 = scmp.ne.s32.totalorder %s51, %s53
      %p60 = scmp.eq.s32.totalorder %s22, 1
      %p61 = por %p59, %p60
      %p62 = scmp.ne.s32.totalorder %s53, %s54
      %p63 = scmp.eq.s32.totalorder %s22, 0
      %p64 = por %p62, %p63
      %p65 = scmp.ne.s32.totalorder %s53, %s54
      %p66 = scmp.eq.s32.totalorder %s23, 1
      %p67 = por %p65, %p66
      %p69 = scmp.ne.s32.totalorder %s54, %s68
      %p70 = scmp.eq.s32.totalorder %s23, 0
      %p71 = por %p69, %p70
      %s73 = sadd.s32 %s72, 1
      %p76 = scmp.eq.s32.totalorder %s17, 1
      %p77 = scmp.ne.s32.totalorder %s72, %s74
      %p78 = scmp.eq.s32.totalorder %s17, 0
      %p79 = por %p77, %p78
      %p80 = scmp.ne.s32.totalorder %s72, %s74
      %p81 = scmp.eq.s32.totalorder %s22, 1
      %p82 = por %p80, %p81
      %p83 = scmp.ne.s32.totalorder %s74, %s75
      %p84 = scmp.eq.s32.totalorder %s22, 0
      %p85 = por %p83, %p84
      %p86 = scmp.ne.s32.totalorder %s74, %s75
      %p87 = scmp.eq.s32.totalorder %s23, 1
      %p88 = por %p86, %p87
      %p90 = scmp.ne.s32.totalorder %s75, %s89
      %p91 = scmp.eq.s32.totalorder %s23, 0
      %p92 = por %p90, %p91
      %s93 = ssub.s32 %s17, %s24
      %p94 = scmp.eq.s32.totalorder %s93, 0
      %s96 = sadd.s32 %s95, 1
      %s97 = scalar_select %p94, %s95, %s96
      %p100 = pneg %p94
      %p101 = scmp.eq.s32.totalorder %s17, 1
      %p102 = por %p100, %p101
      %p103 = scmp.ne.s32.totalorder %s95, %s98
      %p104 = scmp.eq.s32.totalorder %s17, 0
      %p105 = por %p103, %p104
      %p106 = scmp.ne.s32.totalorder %s95, %s98
      %p107 = scmp.eq.s32.totalorder %s22, 1
      %p108 = por %p106, %p107
      %p109 = scmp.ne.s32.totalorder %s98, %s99
      %p110 = scmp.eq.s32.totalorder %s22, 0
      %p111 = por %p109, %p110
      %p112 = scmp.ne.s32.totalorder %s98, %s99
      %p113 = scmp.eq.s32.totalorder %s23, 1
      %p114 = por %p112, %p113
      %p116 = scmp.ne.s32.totalorder %s99, %s115
      %p117 = scmp.eq.s32.totalorder %s23, 0
      %p118 = por %p116, %p117
      %s120 = sadd.s32 %s119, 1
      %p123 = scmp.eq.s32.totalorder %s17, 1
      %p124 = scmp.ne.s32.totalorder %s119, %s121
      %p125 = scmp.eq.s32.totalorder %s17, 0
      %p126 = por %p124, %p125
      %p127 = scmp.ne.s32.totalorder %s119, %s121
      %p128 = scmp.eq.s32.totalorder %s22, 1
      %p129 = por %p127, %p128
      %p130 = scmp.ne.s32.totalorder %s121, %s122
      %p131 = scmp.eq.s32.totalorder %s22, 0
      %p132 = por %p130, %p131
      %p133 = scmp.ne.s32.totalorder %s121, %s122
      %p134 = scmp.eq.s32.totalorder %s23, 1
      %p135 = por %p133, %p134
      %p137 = scmp.ne.s32.totalorder %s122, %s136
      %p138 = scmp.eq.s32.totalorder %s23, 0
      %p139 = por %p137, %p138
      %s141 = sadd.s32 %s140, 1
      %p144 = scmp.eq.s32.totalorder %s17, 1
      %p145 = scmp.ne.s32.totalorder %s140, %s142
      %p146 = scmp.eq.s32.totalorder %s17, 0
      %p147 = por %p145, %p146
      %p148 = scmp.ne.s32.totalorder %s140, %s142
      %p149 = scmp.eq.s32.totalorder %s22, 1
      %p150 = por %p148, %p149
      %p151 = scmp.ne.s32.totalorder %s142, %s143
      %p152 = scmp.eq.s32.totalorder %s22, 0
      %p153 = por %p151, %p152
      %p154 = scmp.ne.s32.totalorder %s142, %s143
      %p155 = scmp.eq.s32.totalorder %s23, 1
      %p156 = por %p154, %p155
      %p158 = scmp.ne.s32.totalorder %s143, %s157
      %p159 = scmp.eq.s32.totalorder %s23, 0
      %p160 = por %p158, %p159
      %s161 = ssub.s32 %s17, %s24
      %p162 = scmp.eq.s32.totalorder %s161, 0
      %s164 = sadd.s32 %s163, 1
      %s165 = scalar_select %p162, %s163, %s164
      %p168 = pneg %p162
      %p169 = scmp.eq.s32.totalorder %s17, 1
      %p170 = por %p168, %p169
      %p171 = scmp.ne.s32.totalorder %s163, %s166
      %p172 = scmp.eq.s32.totalorder %s17, 0
      %p173 = por %p171, %p172
      %p174 = scmp.ne.s32.totalorder %s163, %s166
      %p175 = scmp.eq.s32.totalorder %s22, 1
      %p176 = por %p174, %p175
      %p177 = scmp.ne.s32.totalorder %s166, %s167
      %p178 = scmp.eq.s32.totalorder %s22, 0
      %p179 = por %p177, %p178
      %p180 = scmp.ne.s32.totalorder %s166, %s167
      %p181 = scmp.eq.s32.totalorder %s23, 1
      %p182 = por %p180, %p181
      %p184 = scmp.ne.s32.totalorder %s167, %s183
      %p185 = scmp.eq.s32.totalorder %s23, 0
      %p186 = por %p184, %p185
      %s187 = ssub.s32 %s17, %s24
      %p188 = scmp.eq.s32.totalorder %s187, 0
      %s190 = sadd.s32 %s189, 1
      %s191 = scalar_select %p188, %s189, %s190
      %p194 = pneg %p188
      %p195 = scmp.eq.s32.totalorder %s17, 1
      %p196 = por %p194, %p195
      %p197 = scmp.ne.s32.totalorder %s189, %s192
      %p198 = scmp.eq.s32.totalorder %s17, 0
      %p199 = por %p197, %p198
      %p200 = scmp.ne.s32.totalorder %s189, %s192
      %p201 = scmp.eq.s32.totalorder %s22, 1
      %p202 = por %p200, %p201
      %p203 = scmp.ne.s32.totalorder %s192, %s193
      %p204 = scmp.eq.s32.totalorder %s22, 0
      %p205 = por %p203, %p204
      %p206 = scmp.ne.s32.totalorder %s192, %s193
      %p207 = scmp.eq.s32.totalorder %s23, 1
      %p208 = por %p206, %p207
      %p210 = scmp.ne.s32.totalorder %s193, %s209
      %p211 = scmp.eq.s32.totalorder %s23, 0
      %p212 = por %p210, %p211
      %p213 = scmp.le.s32.totalorder 1, %s17
      %p214 = scmp.lt.s32.totalorder %s17, 3
      %p215 = pnand %p213, %p214
      %p216 = pneg %p215
      // Predicated region
      $region9: #{fccaps_matrix_forward.1} parent=5 // pred_check
        _
      $region10: #{fccaps_matrix_forward.1} parent=5 // pred_check_branch
        %218 = sbr.rel (%p215) target = $region12
      $region11: #{fccaps_matrix_forward.1} parent=5 // pred_region
        %s219 = ssub.s32 %s17, 1
        // Predicated region
        $region13: #{fccaps_matrix_forward.1} parent=11 // pred_check
          %p220 = pneg %p64
        $region14: #{fccaps_matrix_forward.1} parent=11 // pred_check_branch
          %222 = sbr.rel (%p220) target = $region16
        $region15: #{fccaps_matrix_forward.1} parent=11 // pred_region
          _
        $region16: #{fccaps_matrix_forward.1} parent=11 // pred_fallthru
          _
        // Predicated region
        $region17: #{fccaps_matrix_forward.1} parent=11 // pred_check
          %p223 = pneg %p85
        $region18: #{fccaps_matrix_forward.1} parent=11 // pred_check_branch
          %225 = sbr.rel (%p223) target = $region20
        $region19: #{fccaps_matrix_forward.1} parent=11 // pred_region
          _
        $region20: #{fccaps_matrix_forward.1} parent=11 // pred_fallthru
          _
        // Predicated region
        $region21: #{fccaps_matrix_forward.1} parent=11 // pred_check
          %p226 = pneg %p132
        $region22: #{fccaps_matrix_forward.1} parent=11 // pred_check_branch
          %228 = sbr.rel (%p226) target = $region24
        $region23: #{fccaps_matrix_forward.1} parent=11 // pred_region
          _
        $region24: #{fccaps_matrix_forward.1} parent=11 // pred_fallthru
          _
        // Predicated region
        $region25: #{fccaps_matrix_forward.1} parent=11 // pred_check
          %p229 = pneg %p153
        $region26: #{fccaps_matrix_forward.1} parent=11 // pred_check_branch
          %231 = sbr.rel (%p229) target = $region28
        $region27: #{fccaps_matrix_forward.1} parent=11 // pred_region
          _
        $region28: #{fccaps_matrix_forward.1} parent=11 // pred_fallthru
          _
      $region12: #{fccaps_matrix_forward.1} parent=5 // pred_fallthru
        _
      %p232 = scmp.lt.s32.totalorder %s17, 2
      // Predicated region
      $region29: #{fccaps_matrix_forward.1} parent=5 // pred_check
        %p233 = pneg %p232
      $region30: #{fccaps_matrix_forward.1} parent=5 // pred_check_branch
        %235 = sbr.rel (%p233) target = $region32
      $region31: #{fccaps_matrix_forward.1} parent=5 // pred_region
        // Predicated region
        $region33: #{fccaps_matrix_forward.1} parent=31 // pred_check
          %p236 = pneg %p37
        $region34: #{fccaps_matrix_forward.1} parent=31 // pred_check_branch
          %238 = sbr.rel (%p236) target = $region36
        $region35: #{fccaps_matrix_forward.1} parent=31 // pred_region
          %p239 = scmp.lt.s32.totalorder %s17, 1
          %s240 = scalar_select %p239, %s17, 1
          %s241 = smul.addr %s240, 8
          %s242 = smul.addr %s241, 8
          %s243 = scalar_lea.vmem %s0, %s242
        $region36: #{fccaps_matrix_forward.1} parent=31 // pred_fallthru
          _
        // Predicated region
        $region37: #{fccaps_matrix_forward.1} parent=31 // pred_check
          %p244 = pneg %p105
        $region38: #{fccaps_matrix_forward.1} parent=31 // pred_check_branch
          %246 = sbr.rel (%p244) target = $region40
        $region39: #{fccaps_matrix_forward.1} parent=31 // pred_region
          %p247 = scmp.lt.s32.totalorder %s17, 1
          %s248 = scalar_select %p247, %s17, 1
          %s249 = smul.addr %s248, 8
          %s250 = smul.addr %s249, 8
          %s251 = scalar_lea.vmem %s3, %s250
        $region40: #{fccaps_matrix_forward.1} parent=31 // pred_fallthru
          _
      $region32: #{fccaps_matrix_forward.1} parent=5 // pred_fallthru
        _
      %p252 = scmp.le.s32.totalorder 1, %s17
      %p253 = scmp.lt.s32.totalorder %s17, 3
      %p254 = pnand %p252, %p253
      %p255 = pneg %p254
      // Predicated region
      $region41: #{fccaps_matrix_forward.1} parent=5 // pred_check
        _
      $region42: #{fccaps_matrix_forward.1} parent=5 // pred_check_branch
        %257 = sbr.rel (%p254) target = $region44
      $region43: #{fccaps_matrix_forward.1} parent=5 // pred_region
        %s258 = ssub.s32 %s17, 1
        %p259 = scmp.lt.s32.totalorder %s22, 1
        %s260 = scalar_select %p259, %s22, 1
        %s261 = smul.addr %s260, 8
        %s262 = smul.addr %s261, 8
        %s263 = scalar_lea.vmem %s0, %s262
        %p264 = pneg %p43
        %p265 = pneg %p40
        %p266 = pneg %p64
        %p267 = pneg %p61
        %p268 = pneg %p85
        %p269 = pneg %p82
        %p270 = scmp.lt.s32.totalorder %s22, 1
        %s271 = scalar_select %p270, %s22, 1
        %s272 = smul.addr %s271, 8
        %s273 = smul.addr %s272, 8
        %s274 = scalar_lea.vmem %s3, %s273
        %p275 = pneg %p111
        %p276 = pneg %p108
        %p277 = pneg %p132
        %p278 = pneg %p129
        %p279 = pneg %p153
        %p280 = pneg %p150
        %p281 = pneg %p179
        %p282 = pneg %p176
        %p283 = scmp.lt.s32.totalorder %s22, 1
        %s284 = scalar_select %p283, %s22, 1
        %s285 = scalar_lea.vmem %s6, %s284
        %p286 = pneg %p205
        %p287 = pneg %p202
        %s288 = sand.u32 %s192, 1
        %s289 = scalar_lea.sflag [#allocation3], %s288
        %s290 = sand.u32 %s192, 1
        %s291 = scalar_lea.vmem [#allocation2], %s290
        %p292 = scmp.lt.s32.totalorder %s22, 1
        %s293 = scalar_select %p292, %s22, 1
        %s294 = smul.addr %s293, 8
        %s295 = smul.addr %s294, 8
        %s296 = scalar_lea.vmem %s0, %s295
        %p297 = scmp.lt.s32.totalorder %s22, 1
        %s298 = scalar_select %p297, %s22, 1
        %s299 = smul.addr %s298, 8
        %s300 = smul.addr %s299, 8
        %s301 = scalar_lea.vmem %s3, %s300
        %p302 = scmp.lt.s32.totalorder %s22, 1
        %s303 = scalar_select %p302, %s22, 1
        %s304 = scalar_lea.vmem %s6, %s303
        %v305 = vlaneseq
        %v306 = vshrl.u32 %v305, 7
        %v307 = vlaneseq
        %v308 = vand.u32 %v307, 127
        %v309 = vmul.u32 %v306, 16
        %vm310 = vcmp.ge.s32.totalorder %v308, %v309
        %v311 = vadd.s32 %v306, 1
        %v312 = vmul.u32 %v311, 16
        %vm313 = vcmp.lt.s32.totalorder %v308, %v312
        %vm314 = vmand %vm310, %vm313
        %v315 = vsel %vm314, 1, 0
        %v316 = vcvt.s32.f32 %v315
        %v317 = vadd.s32 %v306, 8
        %v318 = vadd.s32 %v306, 16
        %v319 = vadd.s32 %v306, 24
        %v320 = vadd.s32 %v306, 32
        %v321 = vadd.s32 %v306, 40
        %v322 = vadd.s32 %v306, 48
        %v323 = vadd.s32 %v306, 56
        %v324 = vadd.s32 %v306, 64
        %v325 = vadd.s32 %v306, 72
        %v326 = vadd.s32 %v306, 80
        %v327 = vadd.s32 %v306, 88
        %v328 = vadd.s32 %v306, 96
        %v329 = vadd.s32 %v306, 104
        %v330 = vadd.s32 %v306, 112
        %v331 = vadd.s32 %v306, 120
        %v332 = vmul.u32 %v308, 16
        %vm333 = vcmp.ge.s32.totalorder %v306, %v332
        %vm334 = vcmp.ge.s32.totalorder %v317, %v332
        %vm335 = vcmp.ge.s32.totalorder %v318, %v332
        %vm336 = vcmp.ge.s32.totalorder %v319, %v332
        %vm337 = vcmp.ge.s32.totalorder %v320, %v332
        %vm338 = vcmp.ge.s32.totalorder %v321, %v332
        %vm339 = vcmp.ge.s32.totalorder %v322, %v332
        %vm340 = vcmp.ge.s32.totalorder %v323, %v332
        %vm341 = vcmp.ge.s32.totalorder %v324, %v332
        %vm342 = vcmp.ge.s32.totalorder %v325, %v332
        %vm343 = vcmp.ge.s32.totalorder %v326, %v332
        %vm344 = vcmp.ge.s32.totalorder %v327, %v332
        %vm345 = vcmp.ge.s32.totalorder %v328, %v332
        %vm346 = vcmp.ge.s32.totalorder %v329, %v332
        %vm347 = vcmp.ge.s32.totalorder %v330, %v332
        %vm348 = vcmp.ge.s32.totalorder %v331, %v332
        %v349 = vadd.s32 %v308, 1
        %v350 = vmul.u32 %v349, 16
        %vm351 = vcmp.lt.s32.totalorder %v306, %v350
        %vm352 = vcmp.lt.s32.totalorder %v317, %v350
        %vm353 = vcmp.lt.s32.totalorder %v318, %v350
        %vm354 = vcmp.lt.s32.totalorder %v319, %v350
        %vm355 = vcmp.lt.s32.totalorder %v320, %v350
        %vm356 = vcmp.lt.s32.totalorder %v321, %v350
        %vm357 = vcmp.lt.s32.totalorder %v322, %v350
        %vm358 = vcmp.lt.s32.totalorder %v323, %v350
        %vm359 = vcmp.lt.s32.totalorder %v324, %v350
        %vm360 = vcmp.lt.s32.totalorder %v325, %v350
        %vm361 = vcmp.lt.s32.totalorder %v326, %v350
        %vm362 = vcmp.lt.s32.totalorder %v327, %v350
        %vm363 = vcmp.lt.s32.totalorder %v328, %v350
        %vm364 = vcmp.lt.s32.totalorder %v329, %v350
        %vm365 = vcmp.lt.s32.totalorder %v330, %v350
        %vm366 = vcmp.lt.s32.totalorder %v331, %v350
        %vm367 = vmand %vm333, %vm351
        %vm368 = vmand %vm334, %vm352
        %vm369 = vmand %vm335, %vm353
        %vm370 = vmand %vm336, %vm354
        %vm371 = vmand %vm337, %vm355
        %vm372 = vmand %vm338, %vm356
        %vm373 = vmand %vm339, %vm357
        %vm374 = vmand %vm340, %vm358
        %vm375 = vmand %vm341, %vm359
        %vm376 = vmand %vm342, %vm360
        %vm377 = vmand %vm343, %vm361
        %vm378 = vmand %vm344, %vm362
        %vm379 = vmand %vm345, %vm363
        %vm380 = vmand %vm346, %vm364
        %vm381 = vmand %vm347, %vm365
        %vm382 = vmand %vm348, %vm366
        %v383 = vsel %vm367, 1, 0
        %v384 = vsel %vm368, 1, 0
        %v385 = vsel %vm369, 1, 0
        %v386 = vsel %vm370, 1, 0
        %v387 = vsel %vm371, 1, 0
        %v388 = vsel %vm372, 1, 0
        %v389 = vsel %vm373, 1, 0
        %v390 = vsel %vm374, 1, 0
        %v391 = vsel %vm375, 1, 0
        %v392 = vsel %vm376, 1, 0
        %v393 = vsel %vm377, 1, 0
        %v394 = vsel %vm378, 1, 0
        %v395 = vsel %vm379, 1, 0
        %v396 = vsel %vm380, 1, 0
        %v397 = vsel %vm381, 1, 0
        %v398 = vsel %vm382, 1, 0
        %v399 = vcvt.s32.f32 %v383
        %v400 = vcvt.s32.f32 %v384
        %v401 = vcvt.s32.f32 %v385
        %v402 = vcvt.s32.f32 %v386
        %v403 = vcvt.s32.f32 %v387
        %v404 = vcvt.s32.f32 %v388
        %v405 = vcvt.s32.f32 %v389
        %v406 = vcvt.s32.f32 %v390
        %v407 = vcvt.s32.f32 %v391
        %v408 = vcvt.s32.f32 %v392
        %v409 = vcvt.s32.f32 %v393
        %v410 = vcvt.s32.f32 %v394
        %v411 = vcvt.s32.f32 %v395
        %v412 = vcvt.s32.f32 %v396
        %v413 = vcvt.s32.f32 %v397
        %v414 = vcvt.s32.f32 %v398
        %vm415 = vcmp.eq.s32.totalorder %v306, %v308
        %v416 = vsel %vm415, 1, 0
        %v417 = vcvt.s32.f32 %v416
        %v418 = vld [vmem:[%s296] sm:$0xff]
        %v419 = vld [vmem:[%s296 + $0x8] sm:$0xff]
        %v420 = vld [vmem:[%s296 + $0x10] sm:$0xff]
        %v421 = vld [vmem:[%s296 + $0x18] sm:$0xff]
        %v422 = vld [vmem:[%s296 + $0x20] sm:$0xff]
        %v423 = vld [vmem:[%s296 + $0x28] sm:$0xff]
        %v424 = vld [vmem:[%s296 + $0x30] sm:$0xff]
        %v425 = vld [vmem:[%s296 + $0x38] sm:$0xff]
        %v426 = vld [vmem:[%s1] sm:$0xff]
        %v427 = vld [vmem:[%s1 + $0x8] sm:$0xff]
        %v428 = vld [vmem:[%s1 + $0x10] sm:$0xff]
        %v429 = vld [vmem:[%s1 + $0x18] sm:$0xff]
        %v430 = vld [vmem:[%s1 + $0x20] sm:$0xff]
        %v431 = vld [vmem:[%s1 + $0x28] sm:$0xff]
        %v432 = vld [vmem:[%s1 + $0x30] sm:$0xff]
        %v433 = vld [vmem:[%s1 + $0x38] sm:$0xff]
        %v434 = vld [vmem:[%s2] sm:$0xff]
        %v435 = vld [vmem:[%s2 + $0x8] sm:$0xff]
        %v436 = vld [vmem:[%s2 + $0x10] sm:$0xff]
        %v437 = vld [vmem:[%s2 + $0x18] sm:$0xff]
        %v438 = vld [vmem:[%s2 + $0x20] sm:$0xff]
        %v439 = vld [vmem:[%s2 + $0x28] sm:$0xff]
        %v440 = vld [vmem:[%s2 + $0x30] sm:$0xff]
        %v441 = vld [vmem:[%s2 + $0x38] sm:$0xff]
        %vm442 = vcmask 523264
        %v444 = vsel %vm442, %v418, 0
        %v447 = vsel %vm442, %v419, 0
        %v450 = vsel %vm442, %v420, 0
        %v453 = vsel %vm442, %v421, 0
        %v456 = vsel %vm442, %v422, 0
        %v459 = vsel %vm442, %v423, 0
        %v462 = vsel %vm442, %v424, 0
        %v465 = vsel %vm442, %v425, 0
        %467 = vmatprep.subr.mxu0 0.0
        %468 = vmatpush1.msra.mxu0 %v426
        %469 = vmatprep.subr.mxu0 0.0
        %470 = vmatpush1.msra.mxu0 %v427
        %471 = vmatprep.subr.mxu0 0.0
        %472 = vmatpush1.msra.mxu0 %v428
        %473 = vmatprep.subr.mxu0 0.0
        %474 = vmatpush1.msra.mxu0 %v429
        %475 = vmatprep.subr.mxu0 0.0
        %476 = vmatpush1.msra.mxu0 %v430
        %477 = vmatprep.subr.mxu0 0.0
        %478 = vmatpush1.msra.mxu0 %v431
        %479 = vmatprep.subr.mxu0 0.0
        %480 = vmatpush1.msra.mxu0 %v432
        %481 = vmatprep.subr.mxu0 0.0
        %482 = vmatpush1.msra.mxu0 %v433
        %483 = vmatprep.subr.mxu0 0.0
        %484 = vmatpush1.msra.mxu0 0.0
        %485 = vmatprep.subr.mxu0 0.0
        %486 = vmatpush1.msra.mxu0 0.0
        %487 = vmatprep.subr.mxu0 0.0
        %488 = vmatpush1.msra.mxu0 0.0
        %489 = vmatprep.subr.mxu0 0.0
        %490 = vmatpush1.msra.mxu0 0.0
        %491 = vmatprep.subr.mxu0 0.0
        %492 = vmatpush1.msra.mxu0 0.0
        %493 = vmatprep.subr.mxu0 0.0
        %494 = vmatpush1.msra.mxu0 0.0
        %495 = vmatprep.subr.mxu0 0.0
        %496 = vmatpush1.msra.mxu0 0.0
        %497 = vmatprep.subr.mxu0 0.0
        %498 = vmatpush1.msra.mxu0 0.0
        %499 = vmatprep.subr.mxu0 0.0
        %500 = vmatpush1.msra.mxu0 0.0
        %501 = vmatprep.subr.mxu0 0.0
        %502 = vmatpush1.msra.mxu0 0.0
        %503 = vmatprep.subr.mxu0 0.0
        %504 = vmatpush1.msra.mxu0 0.0
        %505 = vmatprep.subr.mxu0 0.0
        %506 = vmatpush1.msra.mxu0 0.0
        %507 = vmatprep.subr.mxu0 0.0
        %508 = vmatpush1.msra.mxu0 0.0
        %509 = vmatprep.subr.mxu0 0.0
        %510 = vmatpush1.msra.mxu0 0.0
        %511 = vmatprep.subr.mxu0 0.0
        %512 = vmatpush1.msra.mxu0 0.0
        %513 = vmatprep.subr.mxu0 0.0
        %514 = vmatpush1.msra.mxu0 0.0
        %515 = vmatprep.subr.mxu0 0.0
        %516 = vmatpush1.msra.mxu0 0.0
        %517 = vmatprep.subr.mxu0 0.0
        %518 = vmatpush1.msra.mxu0 0.0
        %519 = vmatprep.subr.mxu0 0.0
        %520 = vmatpush1.msra.mxu0 0.0
        %521 = vmatprep.subr.mxu0 0.0
        %522 = vmatpush1.msra.mxu0 0.0
        %523 = vmatprep.subr.mxu0 0.0
        %524 = vmatpush1.msra.mxu0 0.0
        %525 = vmatprep.subr.mxu0 0.0
        %526 = vmatpush1.msra.mxu0 0.0
        %527 = vmatprep.subr.mxu0 0.0
        %528 = vmatpush1.msra.mxu0 0.0
        %529 = vmatprep.subr.mxu0 0.0
        %530 = vmatpush1.msra.mxu0 0.0
        %531 = vmatprep.mubr.f32.mxu0 0.0
        %532 = vmatmul.mubr.f32.gmra.mrb[0].mxu0 %v444
        %v533 = vpop.f32.mrb[0].mxu0
        %v534 = vadd.f32 %v434, %v533
        %v535 = vpop.f32.mrb[0].mxu0
        %536 = vmatprep.mubr.f32.mxu0 0.0
        %537 = vmatmul.mubr.f32.gmra.mrb[0].mxu0 %v447
        %v538 = vpop.f32.mrb[0].mxu0
        %v539 = vadd.f32 %v435, %v538
        %v540 = vpop.f32.mrb[0].mxu0
        %541 = vmatprep.mubr.f32.mxu0 0.0
        %542 = vmatmul.mubr.f32.gmra.mrb[0].mxu0 %v450
        %v543 = vpop.f32.mrb[0].mxu0
        %v544 = vadd.f32 %v436, %v543
        %v545 = vpop.f32.mrb[0].mxu0
        %546 = vmatprep.mubr.f32.mxu0 0.0
        %547 = vmatmul.mubr.f32.gmra.mrb[0].mxu0 %v453
        %v548 = vpop.f32.mrb[0].mxu0
        %v549 = vadd.f32 %v437, %v548
        %v550 = vpop.f32.mrb[0].mxu0
        %551 = vmatprep.mubr.f32.mxu0 0.0
        %552 = vmatmul.mubr.f32.gmra.mrb[0].mxu0 %v456
        %v553 = vpop.f32.mrb[0].mxu0
        %v554 = vadd.f32 %v438, %v553
        %v555 = vpop.f32.mrb[0].mxu0
        %556 = vmatprep.mubr.f32.mxu0 0.0
        %557 = vmatmul.mubr.f32.gmra.mrb[0].mxu0 %v459
        %v558 = vpop.f32.mrb[0].mxu0
        %v559 = vadd.f32 %v439, %v558
        %v560 = vpop.f32.mrb[0].mxu0
        %561 = vmatprep.mubr.f32.mxu0 0.0
        %562 = vmatmul.mubr.f32.gmra.mrb[0].mxu0 %v462
        %v563 = vpop.f32.mrb[0].mxu0
        %v564 = vadd.f32 %v440, %v563
        %v565 = vpop.f32.mrb[0].mxu0
        %566 = vmatprep.mubr.f32.mxu0 0.0
        %567 = vmatmul.mubr.f32.gmra.mrb[0].mxu0 %v465
        %v568 = vpop.f32.mrb[0].mxu0
        %v569 = vadd.f32 %v441, %v568
        %v570 = vpop.f32.mrb[0].mxu0
        %571 = vdwg.mxu0
        %v572 = vld [vmem:[%s301] sm:$0xff]
        %v573 = vld [vmem:[%s301 + $0x8] sm:$0xff]
        %v574 = vld [vmem:[%s301 + $0x10] sm:$0xff]
        %v575 = vld [vmem:[%s301 + $0x18] sm:$0xff]
        %v576 = vld [vmem:[%s301 + $0x20] sm:$0xff]
        %v577 = vld [vmem:[%s301 + $0x28] sm:$0xff]
        %v578 = vld [vmem:[%s301 + $0x30] sm:$0xff]
        %v579 = vld [vmem:[%s301 + $0x38] sm:$0xff]
        %v580 = vld [vmem:[%s4] sm:$0x1]
        %v581 = vld [vmem:[%s5] sm:$0x1]
        %583 = vset.pattern.permute.xlu0 0
        %584 = vperm.xlu0 %583, %v572
        %v585 = vpop.permute.xlu0 %584
        %588 = vset.pattern.permute.xlu0 0
        %589 = vperm.xlu0 %588, %v573
        %v590 = vpop.permute.xlu0 %589
        %593 = vset.pattern.permute.xlu0 0
        %594 = vperm.xlu0 %593, %v574
        %v595 = vpop.permute.xlu0 %594
        %598 = vset.pattern.permute.xlu0 0
        %599 = vperm.xlu0 %598, %v575
        %v600 = vpop.permute.xlu0 %599
        %603 = vset.pattern.permute.xlu0 0
        %604 = vperm.xlu0 %603, %v576
        %v605 = vpop.permute.xlu0 %604
        %608 = vset.pattern.permute.xlu0 0
        %609 = vperm.xlu0 %608, %v577
        %v610 = vpop.permute.xlu0 %609
        %613 = vset.pattern.permute.xlu0 0
        %614 = vperm.xlu0 %613, %v578
        %v615 = vpop.permute.xlu0 %614
        %618 = vset.pattern.permute.xlu0 0
        %619 = vperm.xlu0 %618, %v579
        %v620 = vpop.permute.xlu0 %619
        %v622 = vmul.f32 %v585, 0.125
        %v623 = vmul.f32 %v590, 0.125
        %v624 = vmul.f32 %v595, 0.125
        %v625 = vmul.f32 %v600, 0.125
        %v626 = vmul.f32 %v605, 0.125
        %v627 = vmul.f32 %v610, 0.125
        %v628 = vmul.f32 %v615, 0.125
        %v629 = vmul.f32 %v620, 0.125
        %v630 = vadd.f32 %v622, %v623
        %v631 = vadd.f32 %v630, %v624
        %v632 = vadd.f32 %v631, %v625
        %v633 = vadd.f32 %v632, %v626
        %v634 = vadd.f32 %v633, %v627
        %v635 = vadd.f32 %v634, %v628
        %v636 = vadd.f32 %v635, %v629
        %v637 = vrot.slane %v636, 4
        %v638 = vadd.f32 %v636, %v637
        %v639 = vrot.slane %v638, 2
        %v640 = vadd.f32 %v638, %v639
        %v641 = vrot.slane %v640, 1
        %v642 = vadd.f32 %v640, %v641
        %v643 = vadd.f32 %v642, 1e-08
        %v644 = vrcp.pop %v643
        %v645 = vmul.f32 1.0, %v644
        %vm646 = vcmask 64512
        %v648 = vsel %vm646, %v622, 0
        %v651 = vsel %vm646, %v623, 0
        %v654 = vsel %vm646, %v624, 0
        %v657 = vsel %vm646, %v625, 0
        %v660 = vsel %vm646, %v626, 0
        %v663 = vsel %vm646, %v627, 0
        %v666 = vsel %vm646, %v628, 0
        %v669 = vsel %vm646, %v629, 0
        %671 = vmatprep.subr.mxu0 0.0
        %672 = vmatpush1.msra.mxu0 %v316
        %673 = vmatprep.subr.mxu0 0.0
        %674 = vmatpush1.msra.mxu0 0.0
        %675 = vmatprep.subr.mxu0 0.0
        %676 = vmatpush1.msra.mxu0 0.0
        %677 = vmatprep.subr.mxu0 0.0
        %678 = vmatpush1.msra.mxu0 0.0
        %679 = vmatprep.subr.mxu0 0.0
        %680 = vmatpush1.msra.mxu0 0.0
        %681 = vmatprep.subr.mxu0 0.0
        %682 = vmatpush1.msra.mxu0 0.0
        %683 = vmatprep.subr.mxu0 0.0
        %684 = vmatpush1.msra.mxu0 0.0
        %685 = vmatprep.subr.mxu0 0.0
        %686 = vmatpush1.msra.mxu0 0.0
        %687 = vmatprep.subr.mxu0 0.0
        %688 = vmatpush1.msra.mxu0 0.0
        %689 = vmatprep.subr.mxu0 0.0
        %690 = vmatpush1.msra.mxu0 0.0
        %691 = vmatprep.subr.mxu0 0.0
        %692 = vmatpush1.msra.mxu0 0.0
        %693 = vmatprep.subr.mxu0 0.0
        %694 = vmatpush1.msra.mxu0 0.0
        %695 = vmatprep.subr.mxu0 0.0
        %696 = vmatpush1.msra.mxu0 0.0
        %697 = vmatprep.subr.mxu0 0.0
        %698 = vmatpush1.msra.mxu0 0.0
        %699 = vmatprep.subr.mxu0 0.0
        %700 = vmatpush1.msra.mxu0 0.0
        %701 = vmatprep.subr.mxu0 0.0
        %702 = vmatpush1.msra.mxu0 0.0
        %703 = vmatprep.subr.mxu0 0.0
        %704 = vmatpush1.msra.mxu0 0.0
        %705 = vmatprep.subr.mxu0 0.0
        %706 = vmatpush1.msra.mxu0 0.0
        %707 = vmatprep.subr.mxu0 0.0
        %708 = vmatpush1.msra.mxu0 0.0
        %709 = vmatprep.subr.mxu0 0.0
        %710 = vmatpush1.msra.mxu0 0.0
        %711 = vmatprep.subr.mxu0 0.0
        %712 = vmatpush1.msra.mxu0 0.0
        %713 = vmatprep.subr.mxu0 0.0
        %714 = vmatpush1.msra.mxu0 0.0
        %715 = vmatprep.subr.mxu0 0.0
        %716 = vmatpush1.msra.mxu0 0.0
        %717 = vmatprep.subr.mxu0 0.0
        %718 = vmatpush1.msra.mxu0 0.0
        %719 = vmatprep.subr.mxu0 0.0
        %720 = vmatpush1.msra.mxu0 0.0
        %721 = vmatprep.subr.mxu0 0.0
        %722 = vmatpush1.msra.mxu0 0.0
        %723 = vmatprep.subr.mxu0 0.0
        %724 = vmatpush1.msra.mxu0 0.0
        %725 = vmatprep.subr.mxu0 0.0
        %726 = vmatpush1.msra.mxu0 0.0
        %727 = vmatprep.subr.mxu0 0.0
        %728 = vmatpush1.msra.mxu0 0.0
        %729 = vmatprep.subr.mxu0 0.0
        %730 = vmatpush1.msra.mxu0 0.0
        %731 = vmatprep.subr.mxu0 0.0
        %732 = vmatpush1.msra.mxu0 0.0
        %733 = vmatprep.subr.mxu0 0.0
        %734 = vmatpush1.msra.mxu0 0.0
        %735 = vmatprep.mubr.f32.mxu0 0.0
        %736 = vmatmul.mubr.f32.gmra.mrb[0].mxu0 %v648
        %v737 = vpop.f32.mrb[0].mxu0
        %v738 = vadd.f32 0.0, %v737
        %v739 = vpop.f32.mrb[0].mxu0
        %740 = vmatprep.mubr.f32.mxu0 0.0
        %741 = vmatmul.mubr.f32.gmra.mrb[0].mxu0 %v651
        %v742 = vpop.f32.mrb[0].mxu0
        %v743 = vadd.f32 0.0, %v742
        %v744 = vpop.f32.mrb[0].mxu0
        %745 = vmatprep.mubr.f32.mxu0 0.0
        %746 = vmatmul.mubr.f32.gmra.mrb[0].mxu0 %v654
        %v747 = vpop.f32.mrb[0].mxu0
        %v748 = vadd.f32 0.0, %v747
        %v749 = vpop.f32.mrb[0].mxu0
        %750 = vmatprep.mubr.f32.mxu0 0.0
        %751 = vmatmul.mubr.f32.gmra.mrb[0].mxu0 %v657
        %v752 = vpop.f32.mrb[0].mxu0
        %v753 = vadd.f32 0.0, %v752
        %v754 = vpop.f32.mrb[0].mxu0
        %755 = vmatprep.mubr.f32.mxu0 0.0
        %756 = vmatmul.mubr.f32.gmra.mrb[0].mxu0 %v660
        %v757 = vpop.f32.mrb[0].mxu0
        %v758 = vadd.f32 0.0, %v757
        %v759 = vpop.f32.mrb[0].mxu0
        %760 = vmatprep.mubr.f32.mxu0 0.0
        %761 = vmatmul.mubr.f32.gmra.mrb[0].mxu0 %v663
        %v762 = vpop.f32.mrb[0].mxu0
        %v763 = vadd.f32 0.0, %v762
        %v764 = vpop.f32.mrb[0].mxu0
        %765 = vmatprep.mubr.f32.mxu0 0.0
        %766 = vmatmul.mubr.f32.gmra.mrb[0].mxu0 %v666
        %v767 = vpop.f32.mrb[0].mxu0
        %v768 = vadd.f32 0.0, %v767
        %v769 = vpop.f32.mrb[0].mxu0
        %770 = vmatprep.mubr.f32.mxu0 0.0
        %771 = vmatmul.mubr.f32.gmra.mrb[0].mxu0 %v669
        %v772 = vpop.f32.mrb[0].mxu0
        %v773 = vadd.f32 0.0, %v772
        %v774 = vpop.f32.mrb[0].mxu0
        %775 = vdwg.mxu0
        %v777 = vsel %vm646, %v645, 0
        %779 = vmatprep.subr.mxu0 0.0
        %780 = vmatpush1.msra.mxu0 %v316
        %781 = vmatprep.subr.mxu0 0.0
        %782 = vmatpush1.msra.mxu0 0.0
        %783 = vmatprep.subr.mxu0 0.0
        %784 = vmatpush1.msra.mxu0 0.0
        %785 = vmatprep.subr.mxu0 0.0
        %786 = vmatpush1.msra.mxu0 0.0
        %787 = vmatprep.subr.mxu0 0.0
        %788 = vmatpush1.msra.mxu0 0.0
        %789 = vmatprep.subr.mxu0 0.0
        %790 = vmatpush1.msra.mxu0 0.0
        %791 = vmatprep.subr.mxu0 0.0
        %792 = vmatpush1.msra.mxu0 0.0
        %793 = vmatprep.subr.mxu0 0.0
        %794 = vmatpush1.msra.mxu0 0.0
        %795 = vmatprep.subr.mxu0 0.0
        %796 = vmatpush1.msra.mxu0 0.0
        %797 = vmatprep.subr.mxu0 0.0
        %798 = vmatpush1.msra.mxu0 0.0
        %799 = vmatprep.subr.mxu0 0.0
        %800 = vmatpush1.msra.mxu0 0.0
        %801 = vmatprep.subr.mxu0 0.0
        %802 = vmatpush1.msra.mxu0 0.0
        %803 = vmatprep.subr.mxu0 0.0
        %804 = vmatpush1.msra.mxu0 0.0
        %805 = vmatprep.subr.mxu0 0.0
        %806 = vmatpush1.msra.mxu0 0.0
        %807 = vmatprep.subr.mxu0 0.0
        %808 = vmatpush1.msra.mxu0 0.0
        %809 = vmatprep.subr.mxu0 0.0
        %810 = vmatpush1.msra.mxu0 0.0
        %811 = vmatprep.subr.mxu0 0.0
        %812 = vmatpush1.msra.mxu0 0.0
        %813 = vmatprep.subr.mxu0 0.0
        %814 = vmatpush1.msra.mxu0 0.0
        %815 = vmatprep.subr.mxu0 0.0
        %816 = vmatpush1.msra.mxu0 0.0
        %817 = vmatprep.subr.mxu0 0.0
        %818 = vmatpush1.msra.mxu0 0.0
        %819 = vmatprep.subr.mxu0 0.0
        %820 = vmatpush1.msra.mxu0 0.0
        %821 = vmatprep.subr.mxu0 0.0
        %822 = vmatpush1.msra.mxu0 0.0
        %823 = vmatprep.subr.mxu0 0.0
        %824 = vmatpush1.msra.mxu0 0.0
        %825 = vmatprep.subr.mxu0 0.0
        %826 = vmatpush1.msra.mxu0 0.0
        %827 = vmatprep.subr.mxu0 0.0
        %828 = vmatpush1.msra.mxu0 0.0
        %829 = vmatprep.subr.mxu0 0.0
        %830 = vmatpush1.msra.mxu0 0.0
        %831 = vmatprep.subr.mxu0 0.0
        %832 = vmatpush1.msra.mxu0 0.0
        %833 = vmatprep.subr.mxu0 0.0
        %834 = vmatpush1.msra.mxu0 0.0
        %835 = vmatprep.subr.mxu0 0.0
        %836 = vmatpush1.msra.mxu0 0.0
        %837 = vmatprep.subr.mxu0 0.0
        %838 = vmatpush1.msra.mxu0 0.0
        %839 = vmatprep.subr.mxu0 0.0
        %840 = vmatpush1.msra.mxu0 0.0
        %841 = vmatprep.subr.mxu0 0.0
        %842 = vmatpush1.msra.mxu0 0.0
        %843 = vmatprep.mubr.f32.mxu0 0.0
        %844 = vmatmul.mubr.f32.gmra.mrb[0].mxu0 %v777
        %v845 = vpop.f32.mrb[0].mxu0
        %v846 = vadd.f32 0.0, %v845
        %v847 = vpop.f32.mrb[0].mxu0
        %848 = vdwg.mxu0
        %v849 = vmul.f32 %v738, %v534
        %v850 = vmul.f32 %v743, %v539
        %v851 = vmul.f32 %v748, %v544
        %v852 = vmul.f32 %v753, %v549
        %v853 = vmul.f32 %v758, %v554
        %v854 = vmul.f32 %v763, %v559
        %v855 = vmul.f32 %v768, %v564
        %v856 = vmul.f32 %v773, %v569
        %v857 = vadd.f32 %v849, %v850
        %v858 = vadd.f32 %v857, %v851
        %v859 = vadd.f32 %v858, %v852
        %v860 = vadd.f32 %v859, %v853
        %v861 = vadd.f32 %v860, %v854
        %v862 = vadd.f32 %v861, %v855
        %v863 = vadd.f32 %v862, %v856
        %v864 = vrot.slane %v863, 4
        %v865 = vadd.f32 %v863, %v864
        %v866 = vrot.slane %v865, 2
        %v867 = vadd.f32 %v865, %v866
        %v868 = vrot.slane %v867, 1
        %v869 = vadd.f32 %v867, %v868
        %v870 = vmul.f32 %v869, %v846
        %v871 = vlaneseq
        %v872 = vshrl.u32 %v871, 7
        %v873 = vsub.s32 0, %v872
        %v874 = vrot.slane %v870, %v873
        %v875 = vsub.f32 %v534, %v874
        %v876 = vsub.f32 %v539, %v874
        %v877 = vsub.f32 %v544, %v874
        %v878 = vsub.f32 %v549, %v874
        %v879 = vsub.f32 %v554, %v874
        %v880 = vsub.f32 %v559, %v874
        %v881 = vsub.f32 %v564, %v874
        %v882 = vsub.f32 %v569, %v874
        %v883 = vmul.f32 %v875, %v875
        %v884 = vmul.f32 %v876, %v876
        %v885 = vmul.f32 %v877, %v877
        %v886 = vmul.f32 %v878, %v878
        %v887 = vmul.f32 %v879, %v879
        %v888 = vmul.f32 %v880, %v880
        %v889 = vmul.f32 %v881, %v881
        %v890 = vmul.f32 %v882, %v882
        %v891 = vmul.f32 %v738, %v883
        %v892 = vmul.f32 %v743, %v884
        %v893 = vmul.f32 %v748, %v885
        %v894 = vmul.f32 %v753, %v886
        %v895 = vmul.f32 %v758, %v887
        %v896 = vmul.f32 %v763, %v888
        %v897 = vmul.f32 %v768, %v889
        %v898 = vmul.f32 %v773, %v890
        %v899 = vadd.f32 %v891, %v892
        %v900 = vadd.f32 %v899, %v893
        %v901 = vadd.f32 %v900, %v894
        %v902 = vadd.f32 %v901, %v895
        %v903 = vadd.f32 %v902, %v896
        %v904 = vadd.f32 %v903, %v897
        %v905 = vadd.f32 %v904, %v898
        %v906 = vrot.slane %v905, 4
        %v907 = vadd.f32 %v905, %v906
        %v908 = vrot.slane %v907, 2
        %v909 = vadd.f32 %v907, %v908
        %v910 = vrot.slane %v909, 1
        %v911 = vadd.f32 %v909, %v910
        %v912 = vmul.f32 %v911, %v846
        %v913 = vadd.f32 %v912, 1e-08
        %v914 = vlog2.pop %v913
        %v915 = vmul.f32 %v914, 0.6931472
        %v916 = vrcp.pop %v913
        %v917 = vmul.f32 1.0, %v916
        %918 = vmatprep.subr.mxu0 0.0
        %919 = vmatpush1.msra.mxu0 %v399
        %920 = vmatprep.subr.mxu0 0.0
        %921 = vmatpush1.msra.mxu0 %v400
        %922 = vmatprep.subr.mxu0 0.0
        %923 = vmatpush1.msra.mxu0 %v401
        %924 = vmatprep.subr.mxu0 0.0
        %925 = vmatpush1.msra.mxu0 %v402
        %926 = vmatprep.subr.mxu0 0.0
        %927 = vmatpush1.msra.mxu0 %v403
        %928 = vmatprep.subr.mxu0 0.0
        %929 = vmatpush1.msra.mxu0 %v404
        %930 = vmatprep.subr.mxu0 0.0
        %931 = vmatpush1.msra.mxu0 %v405
        %932 = vmatprep.subr.mxu0 0.0
        %933 = vmatpush1.msra.mxu0 %v406
        %934 = vmatprep.subr.mxu0 0.0
        %935 = vmatpush1.msra.mxu0 %v407
        %936 = vmatprep.subr.mxu0 0.0
        %937 = vmatpush1.msra.mxu0 %v408
        %938 = vmatprep.subr.mxu0 0.0
        %939 = vmatpush1.msra.mxu0 %v409
        %940 = vmatprep.subr.mxu0 0.0
        %941 = vmatpush1.msra.mxu0 %v410
        %942 = vmatprep.subr.mxu0 0.0
        %943 = vmatpush1.msra.mxu0 %v411
        %944 = vmatprep.subr.mxu0 0.0
        %945 = vmatpush1.msra.mxu0 %v412
        %946 = vmatprep.subr.mxu0 0.0
        %947 = vmatpush1.msra.mxu0 %v413
        %948 = vmatprep.subr.mxu0 0.0
        %949 = vmatpush1.msra.mxu0 %v414
        %950 = vmatprep.subr.mxu0 0.0
        %951 = vmatpush1.msra.mxu0 0.0
        %952 = vmatprep.subr.mxu0 0.0
        %953 = vmatpush1.msra.mxu0 0.0
        %954 = vmatprep.subr.mxu0 0.0
        %955 = vmatpush1.msra.mxu0 0.0
        %956 = vmatprep.subr.mxu0 0.0
        %957 = vmatpush1.msra.mxu0 0.0
        %958 = vmatprep.subr.mxu0 0.0
        %959 = vmatpush1.msra.mxu0 0.0
        %960 = vmatprep.subr.mxu0 0.0
        %961 = vmatpush1.msra.mxu0 0.0
        %962 = vmatprep.subr.mxu0 0.0
        %963 = vmatpush1.msra.mxu0 0.0
        %964 = vmatprep.subr.mxu0 0.0
        %965 = vmatpush1.msra.mxu0 0.0
        %966 = vmatprep.subr.mxu0 0.0
        %967 = vmatpush1.msra.mxu0 0.0
        %968 = vmatprep.subr.mxu0 0.0
        %969 = vmatpush1.msra.mxu0 0.0
        %970 = vmatprep.subr.mxu0 0.0
        %971 = vmatpush1.msra.mxu0 0.0
        %972 = vmatprep.subr.mxu0 0.0
        %973 = vmatpush1.msra.mxu0 0.0
        %974 = vmatprep.subr.mxu0 0.0
        %975 = vmatpush1.msra.mxu0 0.0
        %976 = vmatprep.subr.mxu0 0.0
        %977 = vmatpush1.msra.mxu0 0.0
        %978 = vmatprep.subr.mxu0 0.0
        %979 = vmatpush1.msra.mxu0 0.0
        %980 = vmatprep.subr.mxu0 0.0
        %981 = vmatpush1.msra.mxu0 0.0
        %982 = vmatprep.mubr.f32.mxu0 0.0
        %983 = vmatmul.mubr.f32.gmra.mrb[0].mxu0 %v915
        %v984 = vpop.f32.mrb[0].mxu0
        %v985 = vadd.f32 0.0, %v984
        %v986 = vpop.f32.mrb[0].mxu0
        %987 = vdwg.mxu0
        %v988 = vmul.f32 %v580, 16.0
        %v989 = vmul.f32 %v985, 0.5
        %v990 = vadd.f32 %v988, %v989
        %v991 = vmul.f32 %v643, %v990
        %v992 = vsub.f32 %v581, %v991
        %v993 = vmul.f32 %v992, -0.01
        %v994 = vmul.f32 %v993, 1.442695
        %v995 = vpow.pop %v994
        %v996 = vadd.f32 %v995, 1.0
        %v997 = vrcp.pop %v996
        %v998 = vmul.f32 1.0, %v997
        %v999 = vlaneseq
        %v1000 = vshrl.u32 %v999, 7
        %v1001 = vsub.s32 0, %v1000
        %v1002 = vrot.slane %v917, %v1001
        %v1003 = vmul.f32 %v883, %v1002
        %v1004 = vmul.f32 %v884, %v1002
        %v1005 = vmul.f32 %v885, %v1002
        %v1006 = vmul.f32 %v886, %v1002
        %v1007 = vmul.f32 %v887, %v1002
        %v1008 = vmul.f32 %v888, %v1002
        %v1009 = vmul.f32 %v889, %v1002
        %v1010 = vmul.f32 %v890, %v1002
        %v1011 = vlaneseq
        %v1012 = vshrl.u32 %v1011, 7
        %v1013 = vsub.s32 0, %v1012
        %v1014 = vrot.slane %v985, %v1013
        %1015 = vmatprep.subr.mxu0 0.0
        %1016 = vmatpush1.msra.mxu0 %v399
        %1017 = vmatprep.subr.mxu0 0.0
        %1018 = vmatpush1.msra.mxu0 %v400
        %1019 = vmatprep.subr.mxu0 0.0
        %1020 = vmatpush1.msra.mxu0 %v401
        %1021 = vmatprep.subr.mxu0 0.0
        %1022 = vmatpush1.msra.mxu0 %v402
        %1023 = vmatprep.subr.mxu0 0.0
        %1024 = vmatpush1.msra.mxu0 %v403
        %1025 = vmatprep.subr.mxu0 0.0
        %1026 = vmatpush1.msra.mxu0 %v404
        %1027 = vmatprep.subr.mxu0 0.0
        %1028 = vmatpush1.msra.mxu0 %v405
        %1029 = vmatprep.subr.mxu0 0.0
        %1030 = vmatpush1.msra.mxu0 %v406
        %1031 = vmatprep.subr.mxu0 0.0
        %1032 = vmatpush1.msra.mxu0 %v407
        %1033 = vmatprep.subr.mxu0 0.0
        %1034 = vmatpush1.msra.mxu0 %v408
        %1035 = vmatprep.subr.mxu0 0.0
        %1036 = vmatpush1.msra.mxu0 %v409
        %1037 = vmatprep.subr.mxu0 0.0
        %1038 = vmatpush1.msra.mxu0 %v410
        %1039 = vmatprep.subr.mxu0 0.0
        %1040 = vmatpush1.msra.mxu0 %v411
        %1041 = vmatprep.subr.mxu0 0.0
        %1042 = vmatpush1.msra.mxu0 %v412
        %1043 = vmatprep.subr.mxu0 0.0
        %1044 = vmatpush1.msra.mxu0 %v413
        %1045 = vmatprep.subr.mxu0 0.0
        %1046 = vmatpush1.msra.mxu0 %v414
        %1047 = vmatprep.subr.mxu0 0.0
        %1048 = vmatpush1.msra.mxu0 0.0
        %1049 = vmatprep.subr.mxu0 0.0
        %1050 = vmatpush1.msra.mxu0 0.0
        %1051 = vmatprep.subr.mxu0 0.0
        %1052 = vmatpush1.msra.mxu0 0.0
        %1053 = vmatprep.subr.mxu0 0.0
        %1054 = vmatpush1.msra.mxu0 0.0
        %1055 = vmatprep.subr.mxu0 0.0
        %1056 = vmatpush1.msra.mxu0 0.0
        %1057 = vmatprep.subr.mxu0 0.0
        %1058 = vmatpush1.msra.mxu0 0.0
        %1059 = vmatprep.subr.mxu0 0.0
        %1060 = vmatpush1.msra.mxu0 0.0
        %1061 = vmatprep.subr.mxu0 0.0
        %1062 = vmatpush1.msra.mxu0 0.0
        %1063 = vmatprep.subr.mxu0 0.0
        %1064 = vmatpush1.msra.mxu0 0.0
        %1065 = vmatprep.subr.mxu0 0.0
        %1066 = vmatpush1.msra.mxu0 0.0
        %1067 = vmatprep.subr.mxu0 0.0
        %1068 = vmatpush1.msra.mxu0 0.0
        %1069 = vmatprep.subr.mxu0 0.0
        %1070 = vmatpush1.msra.mxu0 0.0
        %1071 = vmatprep.subr.mxu0 0.0
        %1072 = vmatpush1.msra.mxu0 0.0
        %1073 = vmatprep.subr.mxu0 0.0
        %1074 = vmatpush1.msra.mxu0 0.0
        %1075 = vmatprep.subr.mxu0 0.0
        %1076 = vmatpush1.msra.mxu0 0.0
        %1077 = vmatprep.subr.mxu0 0.0
        %1078 = vmatpush1.msra.mxu0 0.0
        %1079 = vmatprep.mubr.f32.mxu0 0.0
        %1080 = vmatmul.mubr.f32.gmra.mrb[0].mxu0 %v1003
        %v1081 = vpop.f32.mrb[0].mxu0
        %v1082 = vadd.f32 %v1014, %v1081
        %v1083 = vpop.f32.mrb[0].mxu0
        %1084 = vmatprep.mubr.f32.mxu0 0.0
        %1085 = vmatmul.mubr.f32.gmra.mrb[0].mxu0 %v1004
        %v1086 = vpop.f32.mrb[0].mxu0
        %v1087 = vadd.f32 %v1014, %v1086
        %v1088 = vpop.f32.mrb[0].mxu0
        %1089 = vmatprep.mubr.f32.mxu0 0.0
        %1090 = vmatmul.mubr.f32.gmra.mrb[0].mxu0 %v1005
        %v1091 = vpop.f32.mrb[0].mxu0
        %v1092 = vadd.f32 %v1014, %v1091
        %v1093 = vpop.f32.mrb[0].mxu0
        %1094 = vmatprep.mubr.f32.mxu0 0.0
        %1095 = vmatmul.mubr.f32.gmra.mrb[0].mxu0 %v1006
        %v1096 = vpop.f32.mrb[0].mxu0
        %v1097 = vadd.f32 %v1014, %v1096
        %v1098 = vpop.f32.mrb[0].mxu0
        %1099 = vmatprep.mubr.f32.mxu0 0.0
        %1100 = vmatmul.mubr.f32.gmra.mrb[0].mxu0 %v1007
        %v1101 = vpop.f32.mrb[0].mxu0
        %v1102 = vadd.f32 %v1014, %v1101
        %v1103 = vpop.f32.mrb[0].mxu0
        %1104 = vmatprep.mubr.f32.mxu0 0.0
        %1105 = vmatmul.mubr.f32.gmra.mrb[0].mxu0 %v1008
        %v1106 = vpop.f32.mrb[0].mxu0
        %v1107 = vadd.f32 %v1014, %v1106
        %v1108 = vpop.f32.mrb[0].mxu0
        %1109 = vmatprep.mubr.f32.mxu0 0.0
        %1110 = vmatmul.mubr.f32.gmra.mrb[0].mxu0 %v1009
        %v1111 = vpop.f32.mrb[0].mxu0
        %v1112 = vadd.f32 %v1014, %v1111
        %v1113 = vpop.f32.mrb[0].mxu0
        %1114 = vmatprep.mubr.f32.mxu0 0.0
        %1115 = vmatmul.mubr.f32.gmra.mrb[0].mxu0 %v1010
        %v1116 = vpop.f32.mrb[0].mxu0
        %v1117 = vadd.f32 %v1014, %v1116
        %v1118 = vpop.f32.mrb[0].mxu0
        %1119 = vdwg.mxu0
        %v1120 = vadd.f32 %v1082, 29.406033
        %v1121 = vadd.f32 %v1087, 29.406033
        %v1122 = vadd.f32 %v1092, 29.406033
        %v1123 = vadd.f32 %v1097, 29.406033
        %v1124 = vadd.f32 %v1102, 29.406033
        %v1125 = vadd.f32 %v1107, 29.406033
        %v1126 = vadd.f32 %v1112, 29.406033
        %v1127 = vadd.f32 %v1117, 29.406033
        %v1128 = vmul.f32 %v1120, -0.5
        %v1129 = vmul.f32 %v1121, -0.5
        %v1130 = vmul.f32 %v1122, -0.5
        %v1131 = vmul.f32 %v1123, -0.5
        %v1132 = vmul.f32 %v1124, -0.5
        %v1133 = vmul.f32 %v1125, -0.5
        %v1134 = vmul.f32 %v1126, -0.5
        %v1135 = vmul.f32 %v1127, -0.5
        %v1136 = vadd.f32 %v998, 1e-08
        %v1137 = vlog2.pop %v1136
        %v1138 = vmul.f32 %v1137, 0.6931472
        %v1140 = vlaneseq
        %v1141 = vshrl.u32 %v1140, 7
        %v1142 = vsub.s32 0, %v1141
        %v1143 = vrot.slane %v1138, %v1142
        %v1145 = vadd.f32 %v1128, %v1143
        %v1146 = vadd.f32 %v1129, %v1143
        %v1147 = vadd.f32 %v1130, %v1143
        %v1148 = vadd.f32 %v1131, %v1143
        %v1149 = vadd.f32 %v1132, %v1143
        %v1150 = vadd.f32 %v1133, %v1143
        %v1151 = vadd.f32 %v1134, %v1143
        %v1152 = vadd.f32 %v1135, %v1143
        %v1153 = vsel %vm646, %v1145, -inf
        %1154 = vmax.xlane.f32.xlu0 %v1153
        %v1155 = vpop.xlane.xlu0 %1154
        %v1156 = vsel %vm646, %v1146, -inf
        %1157 = vmax.xlane.f32.xlu0 %v1156
        %v1158 = vpop.xlane.xlu0 %1157
        %v1159 = vsel %vm646, %v1147, -inf
        %1160 = vmax.xlane.f32.xlu0 %v1159
        %v1161 = vpop.xlane.xlu0 %1160
        %v1162 = vsel %vm646, %v1148, -inf
        %1163 = vmax.xlane.f32.xlu0 %v1162
        %v1164 = vpop.xlane.xlu0 %1163
        %v1165 = vsel %vm646, %v1149, -inf
        %1166 = vmax.xlane.f32.xlu0 %v1165
        %v1167 = vpop.xlane.xlu0 %1166
        %v1168 = vsel %vm646, %v1150, -inf
        %1169 = vmax.xlane.f32.xlu0 %v1168
        %v1170 = vpop.xlane.xlu0 %1169
        %v1171 = vsel %vm646, %v1151, -inf
        %1172 = vmax.xlane.f32.xlu0 %v1171
        %v1173 = vpop.xlane.xlu0 %1172
        %v1174 = vsel %vm646, %v1152, -inf
        %1175 = vmax.xlane.f32.xlu0 %v1174
        %v1176 = vpop.xlane.xlu0 %1175
        %v1177 = vsub.f32 %v1145, %v1155
        %v1178 = vsub.f32 %v1146, %v1158
        %v1179 = vsub.f32 %v1147, %v1161
        %v1180 = vsub.f32 %v1148, %v1164
        %v1181 = vsub.f32 %v1149, %v1167
        %v1182 = vsub.f32 %v1150, %v1170
        %v1183 = vsub.f32 %v1151, %v1173
        %v1184 = vsub.f32 %v1152, %v1176
        %v1185 = vmul.f32 %v1177, 1.442695
        %v1186 = vpow.pop %v1185
        %v1187 = vmul.f32 %v1178, 1.442695
        %v1188 = vpow.pop %v1187
        %v1189 = vmul.f32 %v1179, 1.442695
        %v1190 = vpow.pop %v1189
        %v1191 = vmul.f32 %v1180, 1.442695
        %v1192 = vpow.pop %v1191
        %v1193 = vmul.f32 %v1181, 1.442695
        %v1194 = vpow.pop %v1193
        %v1195 = vmul.f32 %v1182, 1.442695
        %v1196 = vpow.pop %v1195
        %v1197 = vmul.f32 %v1183, 1.442695
        %v1198 = vpow.pop %v1197
        %v1199 = vmul.f32 %v1184, 1.442695
        %v1200 = vpow.pop %v1199
        %v1201 = vsel %vm646, %v1186, 0.0
        %1202 = vadd.xlane.f32.xlu0 %v1201
        %v1203 = vpop.xlane.xlu0 %1202
        %v1204 = vsel %vm646, %v1188, 0.0
        %1205 = vadd.xlane.f32.xlu0 %v1204
        %v1206 = vpop.xlane.xlu0 %1205
        %v1207 = vsel %vm646, %v1190, 0.0
        %1208 = vadd.xlane.f32.xlu0 %v1207
        %v1209 = vpop.xlane.xlu0 %1208
        %v1210 = vsel %vm646, %v1192, 0.0
        %1211 = vadd.xlane.f32.xlu0 %v1210
        %v1212 = vpop.xlane.xlu0 %1211
        %v1213 = vsel %vm646, %v1194, 0.0
        %1214 = vadd.xlane.f32.xlu0 %v1213
        %v1215 = vpop.xlane.xlu0 %1214
        %v1216 = vsel %vm646, %v1196, 0.0
        %1217 = vadd.xlane.f32.xlu0 %v1216
        %v1218 = vpop.xlane.xlu0 %1217
        %v1219 = vsel %vm646, %v1198, 0.0
        %1220 = vadd.xlane.f32.xlu0 %v1219
        %v1221 = vpop.xlane.xlu0 %1220
        %v1222 = vsel %vm646, %v1200, 0.0
        %1223 = vadd.xlane.f32.xlu0 %v1222
        %v1224 = vpop.xlane.xlu0 %1223
        %v1225 = vadd.f32 %v1203, 1e-08
        %v1226 = vadd.f32 %v1206, 1e-08
        %v1227 = vadd.f32 %v1209, 1e-08
        %v1228 = vadd.f32 %v1212, 1e-08
        %v1229 = vadd.f32 %v1215, 1e-08
        %v1230 = vadd.f32 %v1218, 1e-08
        %v1231 = vadd.f32 %v1221, 1e-08
        %v1232 = vadd.f32 %v1224, 1e-08
        %v1233 = vrcp.pop %v1225
        %v1234 = vmul.f32 1.0, %v1233
        %v1235 = vrcp.pop %v1226
        %v1236 = vmul.f32 1.0, %v1235
        %v1237 = vrcp.pop %v1227
        %v1238 = vmul.f32 1.0, %v1237
        %v1239 = vrcp.pop %v1228
        %v1240 = vmul.f32 1.0, %v1239
        %v1241 = vrcp.pop %v1229
        %v1242 = vmul.f32 1.0, %v1241
        %v1243 = vrcp.pop %v1230
        %v1244 = vmul.f32 1.0, %v1243
        %v1245 = vrcp.pop %v1231
        %v1246 = vmul.f32 1.0, %v1245
        %v1247 = vrcp.pop %v1232
        %v1248 = vmul.f32 1.0, %v1247
        %v1249 = vmul.f32 %v1186, %v1234
        %v1250 = vmul.f32 %v1188, %v1236
        %v1251 = vmul.f32 %v1190, %v1238
        %v1252 = vmul.f32 %v1192, %v1240
        %v1253 = vmul.f32 %v1194, %v1242
        %v1254 = vmul.f32 %v1196, %v1244
        %v1255 = vmul.f32 %v1198, %v1246
        %v1256 = vmul.f32 %v1200, %v1248
        %v1257 = vmul.f32 %v1249, %v585
        %v1258 = vmul.f32 %v1250, %v590
        %v1259 = vmul.f32 %v1251, %v595
        %v1260 = vmul.f32 %v1252, %v600
        %v1261 = vmul.f32 %v1253, %v605
        %v1262 = vmul.f32 %v1254, %v610
        %v1263 = vmul.f32 %v1255, %v615
        %v1264 = vmul.f32 %v1256, %v620
        %v1265 = vsel %vm646, %v1257, 0.0
        %v1266 = vsel %vm646, %v1258, 0.0
        %v1267 = vadd.f32 %v1265, %v1266
        %v1268 = vsel %vm646, %v1259, 0.0
        %v1269 = vadd.f32 %v1267, %v1268
        %v1270 = vsel %vm646, %v1260, 0.0
        %v1271 = vadd.f32 %v1269, %v1270
        %v1272 = vsel %vm646, %v1261, 0.0
        %v1273 = vadd.f32 %v1271, %v1272
        %v1274 = vsel %vm646, %v1262, 0.0
        %v1275 = vadd.f32 %v1273, %v1274
        %v1276 = vsel %vm646, %v1263, 0.0
        %v1277 = vadd.f32 %v1275, %v1276
        %v1278 = vsel %vm646, %v1264, 0.0
        %v1279 = vadd.f32 %v1277, %v1278
        %v1280 = vrot.slane %v1279, 4
        %v1281 = vadd.f32 %v1279, %v1280
        %v1282 = vrot.slane %v1281, 2
        %v1283 = vadd.f32 %v1281, %v1282
        %v1284 = vrot.slane %v1283, 1
        %v1285 = vadd.f32 %v1283, %v1284
        %v1286 = vadd.f32 %v1285, 1e-08
        %v1287 = vrcp.pop %v1286
        %v1288 = vmul.f32 1.0, %v1287
        %v1290 = vsel %vm646, %v1257, 0
        %v1293 = vsel %vm646, %v1258, 0
        %v1296 = vsel %vm646, %v1259, 0
        %v1299 = vsel %vm646, %v1260, 0
        %v1302 = vsel %vm646, %v1261, 0
        %v1305 = vsel %vm646, %v1262, 0
        %v1308 = vsel %vm646, %v1263, 0
        %v1311 = vsel %vm646, %v1264, 0
        %1313 = vmatprep.subr.mxu0 0.0
        %1314 = vmatpush1.msra.mxu0 %v316
        %1315 = vmatprep.subr.mxu0 0.0
        %1316 = vmatpush1.msra.mxu0 0.0
        %1317 = vmatprep.subr.mxu0 0.0
        %1318 = vmatpush1.msra.mxu0 0.0
        %1319 = vmatprep.subr.mxu0 0.0
        %1320 = vmatpush1.msra.mxu0 0.0
        %1321 = vmatprep.subr.mxu0 0.0
        %1322 = vmatpush1.msra.mxu0 0.0
        %1323 = vmatprep.subr.mxu0 0.0
        %1324 = vmatpush1.msra.mxu0 0.0
        %1325 = vmatprep.subr.mxu0 0.0
        %1326 = vmatpush1.msra.mxu0 0.0
        %1327 = vmatprep.subr.mxu0 0.0
        %1328 = vmatpush1.msra.mxu0 0.0
        %1329 = vmatprep.subr.mxu0 0.0
        %1330 = vmatpush1.msra.mxu0 0.0
        %1331 = vmatprep.subr.mxu0 0.0
        %1332 = vmatpush1.msra.mxu0 0.0
        %1333 = vmatprep.subr.mxu0 0.0
        %1334 = vmatpush1.msra.mxu0 0.0
        %1335 = vmatprep.subr.mxu0 0.0
        %1336 = vmatpush1.msra.mxu0 0.0
        %1337 = vmatprep.subr.mxu0 0.0
        %1338 = vmatpush1.msra.mxu0 0.0
        %1339 = vmatprep.subr.mxu0 0.0
        %1340 = vmatpush1.msra.mxu0 0.0
        %1341 = vmatprep.subr.mxu0 0.0
        %1342 = vmatpush1.msra.mxu0 0.0
        %1343 = vmatprep.subr.mxu0 0.0
        %1344 = vmatpush1.msra.mxu0 0.0
        %1345 = vmatprep.subr.mxu0 0.0
        %1346 = vmatpush1.msra.mxu0 0.0
        %1347 = vmatprep.subr.mxu0 0.0
        %1348 = vmatpush1.msra.mxu0 0.0
        %1349 = vmatprep.subr.mxu0 0.0
        %1350 = vmatpush1.msra.mxu0 0.0
        %1351 = vmatprep.subr.mxu0 0.0
        %1352 = vmatpush1.msra.mxu0 0.0
        %1353 = vmatprep.subr.mxu0 0.0
        %1354 = vmatpush1.msra.mxu0 0.0
        %1355 = vmatprep.subr.mxu0 0.0
        %1356 = vmatpush1.msra.mxu0 0.0
        %1357 = vmatprep.subr.mxu0 0.0
        %1358 = vmatpush1.msra.mxu0 0.0
        %1359 = vmatprep.subr.mxu0 0.0
        %1360 = vmatpush1.msra.mxu0 0.0
        %1361 = vmatprep.subr.mxu0 0.0
        %1362 = vmatpush1.msra.mxu0 0.0
        %1363 = vmatprep.subr.mxu0 0.0
        %1364 = vmatpush1.msra.mxu0 0.0
        %1365 = vmatprep.subr.mxu0 0.0
        %1366 = vmatpush1.msra.mxu0 0.0
        %1367 = vmatprep.subr.mxu0 0.0
        %1368 = vmatpush1.msra.mxu0 0.0
        %1369 = vmatprep.subr.mxu0 0.0
        %1370 = vmatpush1.msra.mxu0 0.0
        %1371 = vmatprep.subr.mxu0 0.0
        %1372 = vmatpush1.msra.mxu0 0.0
        %1373 = vmatprep.subr.mxu0 0.0
        %1374 = vmatpush1.msra.mxu0 0.0
        %1375 = vmatprep.subr.mxu0 0.0
        %1376 = vmatpush1.msra.mxu0 0.0
        %1377 = vmatprep.mubr.f32.mxu0 0.0
        %1378 = vmatmul.mubr.f32.gmra.mrb[0].mxu0 %v1290
        %v1379 = vpop.f32.mrb[0].mxu0
        %v1380 = vadd.f32 0.0, %v1379
        %v1381 = vpop.f32.mrb[0].mxu0
        %1382 = vmatprep.mubr.f32.mxu0 0.0
        %1383 = vmatmul.mubr.f32.gmra.mrb[0].mxu0 %v1293
        %v1384 = vpop.f32.mrb[0].mxu0
        %v1385 = vadd.f32 0.0, %v1384
        %v1386 = vpop.f32.mrb[0].mxu0
        %1387 = vmatprep.mubr.f32.mxu0 0.0
        %1388 = vmatmul.mubr.f32.gmra.mrb[0].mxu0 %v1296
        %v1389 = vpop.f32.mrb[0].mxu0
        %v1390 = vadd.f32 0.0, %v1389
        %v1391 = vpop.f32.mrb[0].mxu0
        %1392 = vmatprep.mubr.f32.mxu0 0.0
        %1393 = vmatmul.mubr.f32.gmra.mrb[0].mxu0 %v1299
        %v1394 = vpop.f32.mrb[0].mxu0
        %v1395 = vadd.f32 0.0, %v1394
        %v1396 = vpop.f32.mrb[0].mxu0
        %1397 = vmatprep.mubr.f32.mxu0 0.0
        %1398 = vmatmul.mubr.f32.gmra.mrb[0].mxu0 %v1302
        %v1399 = vpop.f32.mrb[0].mxu0
        %v1400 = vadd.f32 0.0, %v1399
        %v1401 = vpop.f32.mrb[0].mxu0
        %1402 = vmatprep.mubr.f32.mxu0 0.0
        %1403 = vmatmul.mubr.f32.gmra.mrb[0].mxu0 %v1305
        %v1404 = vpop.f32.mrb[0].mxu0
        %v1405 = vadd.f32 0.0, %v1404
        %v1406 = vpop.f32.mrb[0].mxu0
        %1407 = vmatprep.mubr.f32.mxu0 0.0
        %1408 = vmatmul.mubr.f32.gmra.mrb[0].mxu0 %v1308
        %v1409 = vpop.f32.mrb[0].mxu0
        %v1410 = vadd.f32 0.0, %v1409
        %v1411 = vpop.f32.mrb[0].mxu0
        %1412 = vmatprep.mubr.f32.mxu0 0.0
        %1413 = vmatmul.mubr.f32.gmra.mrb[0].mxu0 %v1311
        %v1414 = vpop.f32.mrb[0].mxu0
        %v1415 = vadd.f32 0.0, %v1414
        %v1416 = vpop.f32.mrb[0].mxu0
        %1417 = vdwg.mxu0
        %v1419 = vsel %vm646, %v1288, 0
        %1421 = vmatprep.subr.mxu0 0.0
        %1422 = vmatpush1.msra.mxu0 %v316
        %1423 = vmatprep.subr.mxu0 0.0
        %1424 = vmatpush1.msra.mxu0 0.0
        %1425 = vmatprep.subr.mxu0 0.0
        %1426 = vmatpush1.msra.mxu0 0.0
        %1427 = vmatprep.subr.mxu0 0.0
        %1428 = vmatpush1.msra.mxu0 0.0
        %1429 = vmatprep.subr.mxu0 0.0
        %1430 = vmatpush1.msra.mxu0 0.0
        %1431 = vmatprep.subr.mxu0 0.0
        %1432 = vmatpush1.msra.mxu0 0.0
        %1433 = vmatprep.subr.mxu0 0.0
        %1434 = vmatpush1.msra.mxu0 0.0
        %1435 = vmatprep.subr.mxu0 0.0
        %1436 = vmatpush1.msra.mxu0 0.0
        %1437 = vmatprep.subr.mxu0 0.0
        %1438 = vmatpush1.msra.mxu0 0.0
        %1439 = vmatprep.subr.mxu0 0.0
        %1440 = vmatpush1.msra.mxu0 0.0
        %1441 = vmatprep.subr.mxu0 0.0
        %1442 = vmatpush1.msra.mxu0 0.0
        %1443 = vmatprep.subr.mxu0 0.0
        %1444 = vmatpush1.msra.mxu0 0.0
        %1445 = vmatprep.subr.mxu0 0.0
        %1446 = vmatpush1.msra.mxu0 0.0
        %1447 = vmatprep.subr.mxu0 0.0
        %1448 = vmatpush1.msra.mxu0 0.0
        %1449 = vmatprep.subr.mxu0 0.0
        %1450 = vmatpush1.msra.mxu0 0.0
        %1451 = vmatprep.subr.mxu0 0.0
        %1452 = vmatpush1.msra.mxu0 0.0
        %1453 = vmatprep.subr.mxu0 0.0
        %1454 = vmatpush1.msra.mxu0 0.0
        %1455 = vmatprep.subr.mxu0 0.0
        %1456 = vmatpush1.msra.mxu0 0.0
        %1457 = vmatprep.subr.mxu0 0.0
        %1458 = vmatpush1.msra.mxu0 0.0
        %1459 = vmatprep.subr.mxu0 0.0
        %1460 = vmatpush1.msra.mxu0 0.0
        %1461 = vmatprep.subr.mxu0 0.0
        %1462 = vmatpush1.msra.mxu0 0.0
        %1463 = vmatprep.subr.mxu0 0.0
        %1464 = vmatpush1.msra.mxu0 0.0
        %1465 = vmatprep.subr.mxu0 0.0
        %1466 = vmatpush1.msra.mxu0 0.0
        %1467 = vmatprep.subr.mxu0 0.0
        %1468 = vmatpush1.msra.mxu0 0.0
        %1469 = vmatprep.subr.mxu0 0.0
        %1470 = vmatpush1.msra.mxu0 0.0
        %1471 = vmatprep.subr.mxu0 0.0
        %1472 = vmatpush1.msra.mxu0 0.0
        %1473 = vmatprep.subr.mxu0 0.0
        %1474 = vmatpush1.msra.mxu0 0.0
        %1475 = vmatprep.subr.mxu0 0.0
        %1476 = vmatpush1.msra.mxu0 0.0
        %1477 = vmatprep.subr.mxu0 0.0
        %1478 = vmatpush1.msra.mxu0 0.0
        %1479 = vmatprep.subr.mxu0 0.0
        %1480 = vmatpush1.msra.mxu0 0.0
        %1481 = vmatprep.subr.mxu0 0.0
        %1482 = vmatpush1.msra.mxu0 0.0
        %1483 = vmatprep.subr.mxu0 0.0
        %1484 = vmatpush1.msra.mxu0 0.0
        %1485 = vmatprep.mubr.f32.mxu0 0.0
        %1486 = vmatmul.mubr.f32.gmra.mrb[0].mxu0 %v1419
        %v1487 = vpop.f32.mrb[0].mxu0
        %v1488 = vadd.f32 0.0, %v1487
        %v1489 = vpop.f32.mrb[0].mxu0
        %1490 = vdwg.mxu0
        %v1491 = vmul.f32 %v1380, %v534
        %v1492 = vmul.f32 %v1385, %v539
        %v1493 = vmul.f32 %v1390, %v544
        %v1494 = vmul.f32 %v1395, %v549
        %v1495 = vmul.f32 %v1400, %v554
        %v1496 = vmul.f32 %v1405, %v559
        %v1497 = vmul.f32 %v1410, %v564
        %v1498 = vmul.f32 %v1415, %v569
        %v1499 = vadd.f32 %v1491, %v1492
        %v1500 = vadd.f32 %v1499, %v1493
        %v1501 = vadd.f32 %v1500, %v1494
        %v1502 = vadd.f32 %v1501, %v1495
        %v1503 = vadd.f32 %v1502, %v1496
        %v1504 = vadd.f32 %v1503, %v1497
        %v1505 = vadd.f32 %v1504, %v1498
        %v1506 = vrot.slane %v1505, 4
        %v1507 = vadd.f32 %v1505, %v1506
        %v1508 = vrot.slane %v1507, 2
        %v1509 = vadd.f32 %v1507, %v1508
        %v1510 = vrot.slane %v1509, 1
        %v1511 = vadd.f32 %v1509, %v1510
        %v1512 = vmul.f32 %v1511, %v1488
        %v1513 = vlaneseq
        %v1514 = vshrl.u32 %v1513, 7
        %v1515 = vsub.s32 0, %v1514
        %v1516 = vrot.slane %v1512, %v1515
        %v1517 = vsub.f32 %v534, %v1516
        %v1518 = vsub.f32 %v539, %v1516
        %v1519 = vsub.f32 %v544, %v1516
        %v1520 = vsub.f32 %v549, %v1516
        %v1521 = vsub.f32 %v554, %v1516
        %v1522 = vsub.f32 %v559, %v1516
        %v1523 = vsub.f32 %v564, %v1516
        %v1524 = vsub.f32 %v569, %v1516
        %v1525 = vmul.f32 %v1517, %v1517
        %v1526 = vmul.f32 %v1518, %v1518
        %v1527 = vmul.f32 %v1519, %v1519
        %v1528 = vmul.f32 %v1520, %v1520
        %v1529 = vmul.f32 %v1521, %v1521
        %v1530 = vmul.f32 %v1522, %v1522
        %v1531 = vmul.f32 %v1523, %v1523
        %v1532 = vmul.f32 %v1524, %v1524
        %v1533 = vmul.f32 %v1380, %v1525
        %v1534 = vmul.f32 %v1385, %v1526
        %v1535 = vmul.f32 %v1390, %v1527
        %v1536 = vmul.f32 %v1395, %v1528
        %v1537 = vmul.f32 %v1400, %v1529
        %v1538 = vmul.f32 %v1405, %v1530
        %v1539 = vmul.f32 %v1410, %v1531
        %v1540 = vmul.f32 %v1415, %v1532
        %v1541 = vadd.f32 %v1533, %v1534
        %v1542 = vadd.f32 %v1541, %v1535
        %v1543 = vadd.f32 %v1542, %v1536
        %v1544 = vadd.f32 %v1543, %v1537
        %v1545 = vadd.f32 %v1544, %v1538
        %v1546 = vadd.f32 %v1545, %v1539
        %v1547 = vadd.f32 %v1546, %v1540
        %v1548 = vrot.slane %v1547, 4
        %v1549 = vadd.f32 %v1547, %v1548
        %v1550 = vrot.slane %v1549, 2
        %v1551 = vadd.f32 %v1549, %v1550
        %v1552 = vrot.slane %v1551, 1
        %v1553 = vadd.f32 %v1551, %v1552
        %v1554 = vmul.f32 %v1553, %v1488
        %v1555 = vadd.f32 %v1554, 1e-08
        %v1556 = vlog2.pop %v1555
        %v1557 = vmul.f32 %v1556, 0.6931472
        %v1558 = vrcp.pop %v1555
        %v1559 = vmul.f32 1.0, %v1558
        %1560 = vmatprep.subr.mxu0 0.0
        %1561 = vmatpush1.msra.mxu0 %v399
        %1562 = vmatprep.subr.mxu0 0.0
        %1563 = vmatpush1.msra.mxu0 %v400
        %1564 = vmatprep.subr.mxu0 0.0
        %1565 = vmatpush1.msra.mxu0 %v401
        %1566 = vmatprep.subr.mxu0 0.0
        %1567 = vmatpush1.msra.mxu0 %v402
        %1568 = vmatprep.subr.mxu0 0.0
        %1569 = vmatpush1.msra.mxu0 %v403
        %1570 = vmatprep.subr.mxu0 0.0
        %1571 = vmatpush1.msra.mxu0 %v404
        %1572 = vmatprep.subr.mxu0 0.0
        %1573 = vmatpush1.msra.mxu0 %v405
        %1574 = vmatprep.subr.mxu0 0.0
        %1575 = vmatpush1.msra.mxu0 %v406
        %1576 = vmatprep.subr.mxu0 0.0
        %1577 = vmatpush1.msra.mxu0 %v407
        %1578 = vmatprep.subr.mxu0 0.0
        %1579 = vmatpush1.msra.mxu0 %v408
        %1580 = vmatprep.subr.mxu0 0.0
        %1581 = vmatpush1.msra.mxu0 %v409
        %1582 = vmatprep.subr.mxu0 0.0
        %1583 = vmatpush1.msra.mxu0 %v410
        %1584 = vmatprep.subr.mxu0 0.0
        %1585 = vmatpush1.msra.mxu0 %v411
        %1586 = vmatprep.subr.mxu0 0.0
        %1587 = vmatpush1.msra.mxu0 %v412
        %1588 = vmatprep.subr.mxu0 0.0
        %1589 = vmatpush1.msra.mxu0 %v413
        %1590 = vmatprep.subr.mxu0 0.0
        %1591 = vmatpush1.msra.mxu0 %v414
        %1592 = vmatprep.subr.mxu0 0.0
        %1593 = vmatpush1.msra.mxu0 0.0
        %1594 = vmatprep.subr.mxu0 0.0
        %1595 = vmatpush1.msra.mxu0 0.0
        %1596 = vmatprep.subr.mxu0 0.0
        %1597 = vmatpush1.msra.mxu0 0.0
        %1598 = vmatprep.subr.mxu0 0.0
        %1599 = vmatpush1.msra.mxu0 0.0
        %1600 = vmatprep.subr.mxu0 0.0
        %1601 = vmatpush1.msra.mxu0 0.0
        %1602 = vmatprep.subr.mxu0 0.0
        %1603 = vmatpush1.msra.mxu0 0.0
        %1604 = vmatprep.subr.mxu0 0.0
        %1605 = vmatpush1.msra.mxu0 0.0
        %1606 = vmatprep.subr.mxu0 0.0
        %1607 = vmatpush1.msra.mxu0 0.0
        %1608 = vmatprep.subr.mxu0 0.0
        %1609 = vmatpush1.msra.mxu0 0.0
        %1610 = vmatprep.subr.mxu0 0.0
        %1611 = vmatpush1.msra.mxu0 0.0
        %1612 = vmatprep.subr.mxu0 0.0
        %1613 = vmatpush1.msra.mxu0 0.0
        %1614 = vmatprep.subr.mxu0 0.0
        %1615 = vmatpush1.msra.mxu0 0.0
        %1616 = vmatprep.subr.mxu0 0.0
        %1617 = vmatpush1.msra.mxu0 0.0
        %1618 = vmatprep.subr.mxu0 0.0
        %1619 = vmatpush1.msra.mxu0 0.0
        %1620 = vmatprep.subr.mxu0 0.0
        %1621 = vmatpush1.msra.mxu0 0.0
        %1622 = vmatprep.subr.mxu0 0.0
        %1623 = vmatpush1.msra.mxu0 0.0
        %1624 = vmatprep.mubr.f32.mxu0 0.0
        %1625 = vmatmul.mubr.f32.gmra.mrb[0].mxu0 %v1557
        %v1626 = vpop.f32.mrb[0].mxu0
        %v1627 = vadd.f32 0.0, %v1626
        %v1628 = vpop.f32.mrb[0].mxu0
        %1629 = vdwg.mxu0
        %v1630 = vmul.f32 %v1627, 0.5
        %v1631 = vadd.f32 %v988, %v1630
        %v1632 = vmul.f32 %v1286, %v1631
        %v1633 = vsub.f32 %v581, %v1632
        %v1634 = vmul.f32 %v1633, -0.01
        %v1635 = vmul.f32 %v1634, 1.442695
        %v1636 = vpow.pop %v1635
        %v1637 = vadd.f32 %v1636, 1.0
        %v1638 = vrcp.pop %v1637
        %v1639 = vmul.f32 1.0, %v1638
        %v1640 = vlaneseq
        %v1641 = vshrl.u32 %v1640, 7
        %v1642 = vsub.s32 0, %v1641
        %v1643 = vrot.slane %v1559, %v1642
        %v1644 = vmul.f32 %v1525, %v1643
        %v1645 = vmul.f32 %v1526, %v1643
        %v1646 = vmul.f32 %v1527, %v1643
        %v1647 = vmul.f32 %v1528, %v1643
        %v1648 = vmul.f32 %v1529, %v1643
        %v1649 = vmul.f32 %v1530, %v1643
        %v1650 = vmul.f32 %v1531, %v1643
        %v1651 = vmul.f32 %v1532, %v1643
        %v1652 = vlaneseq
        %v1653 = vshrl.u32 %v1652, 7
        %v1654 = vsub.s32 0, %v1653
        %v1655 = vrot.slane %v1627, %v1654
        %1656 = vmatprep.subr.mxu0 0.0
        %1657 = vmatpush1.msra.mxu0 %v399
        %1658 = vmatprep.subr.mxu0 0.0
        %1659 = vmatpush1.msra.mxu0 %v400
        %1660 = vmatprep.subr.mxu0 0.0
        %1661 = vmatpush1.msra.mxu0 %v401
        %1662 = vmatprep.subr.mxu0 0.0
        %1663 = vmatpush1.msra.mxu0 %v402
        %1664 = vmatprep.subr.mxu0 0.0
        %1665 = vmatpush1.msra.mxu0 %v403
        %1666 = vmatprep.subr.mxu0 0.0
        %1667 = vmatpush1.msra.mxu0 %v404
        %1668 = vmatprep.subr.mxu0 0.0
        %1669 = vmatpush1.msra.mxu0 %v405
        %1670 = vmatprep.subr.mxu0 0.0
        %1671 = vmatpush1.msra.mxu0 %v406
        %1672 = vmatprep.subr.mxu0 0.0
        %1673 = vmatpush1.msra.mxu0 %v407
        %1674 = vmatprep.subr.mxu0 0.0
        %1675 = vmatpush1.msra.mxu0 %v408
        %1676 = vmatprep.subr.mxu0 0.0
        %1677 = vmatpush1.msra.mxu0 %v409
        %1678 = vmatprep.subr.mxu0 0.0
        %1679 = vmatpush1.msra.mxu0 %v410
        %1680 = vmatprep.subr.mxu0 0.0
        %1681 = vmatpush1.msra.mxu0 %v411
        %1682 = vmatprep.subr.mxu0 0.0
        %1683 = vmatpush1.msra.mxu0 %v412
        %1684 = vmatprep.subr.mxu0 0.0
        %1685 = vmatpush1.msra.mxu0 %v413
        %1686 = vmatprep.subr.mxu0 0.0
        %1687 = vmatpush1.msra.mxu0 %v414
        %1688 = vmatprep.subr.mxu0 0.0
        %1689 = vmatpush1.msra.mxu0 0.0
        %1690 = vmatprep.subr.mxu0 0.0
        %1691 = vmatpush1.msra.mxu0 0.0
        %1692 = vmatprep.subr.mxu0 0.0
        %1693 = vmatpush1.msra.mxu0 0.0
        %1694 = vmatprep.subr.mxu0 0.0
        %1695 = vmatpush1.msra.mxu0 0.0
        %1696 = vmatprep.subr.mxu0 0.0
        %1697 = vmatpush1.msra.mxu0 0.0
        %1698 = vmatprep.subr.mxu0 0.0
        %1699 = vmatpush1.msra.mxu0 0.0
        %1700 = vmatprep.subr.mxu0 0.0
        %1701 = vmatpush1.msra.mxu0 0.0
        %1702 = vmatprep.subr.mxu0 0.0
        %1703 = vmatpush1.msra.mxu0 0.0
        %1704 = vmatprep.subr.mxu0 0.0
        %1705 = vmatpush1.msra.mxu0 0.0
        %1706 = vmatprep.subr.mxu0 0.0
        %1707 = vmatpush1.msra.mxu0 0.0
        %1708 = vmatprep.subr.mxu0 0.0
        %1709 = vmatpush1.msra.mxu0 0.0
        %1710 = vmatprep.subr.mxu0 0.0
        %1711 = vmatpush1.msra.mxu0 0.0
        %1712 = vmatprep.subr.mxu0 0.0
        %1713 = vmatpush1.msra.mxu0 0.0
        %1714 = vmatprep.subr.mxu0 0.0
        %1715 = vmatpush1.msra.mxu0 0.0
        %1716 = vmatprep.subr.mxu0 0.0
        %1717 = vmatpush1.msra.mxu0 0.0
        %1718 = vmatprep.subr.mxu0 0.0
        %1719 = vmatpush1.msra.mxu0 0.0
        %1720 = vmatprep.mubr.f32.mxu0 0.0
        %1721 = vmatmul.mubr.f32.gmra.mrb[0].mxu0 %v1644
        %v1722 = vpop.f32.mrb[0].mxu0
        %v1723 = vadd.f32 %v1655, %v1722
        %v1724 = vpop.f32.mrb[0].mxu0
        %1725 = vmatprep.mubr.f32.mxu0 0.0
        %1726 = vmatmul.mubr.f32.gmra.mrb[0].mxu0 %v1645
        %v1727 = vpop.f32.mrb[0].mxu0
        %v1728 = vadd.f32 %v1655, %v1727
        %v1729 = vpop.f32.mrb[0].mxu0
        %1730 = vmatprep.mubr.f32.mxu0 0.0
        %1731 = vmatmul.mubr.f32.gmra.mrb[0].mxu0 %v1646
        %v1732 = vpop.f32.mrb[0].mxu0
        %v1733 = vadd.f32 %v1655, %v1732
        %v1734 = vpop.f32.mrb[0].mxu0
        %1735 = vmatprep.mubr.f32.mxu0 0.0
        %1736 = vmatmul.mubr.f32.gmra.mrb[0].mxu0 %v1647
        %v1737 = vpop.f32.mrb[0].mxu0
        %v1738 = vadd.f32 %v1655, %v1737
        %v1739 = vpop.f32.mrb[0].mxu0
        %1740 = vmatprep.mubr.f32.mxu0 0.0
        %1741 = vmatmul.mubr.f32.gmra.mrb[0].mxu0 %v1648
        %v1742 = vpop.f32.mrb[0].mxu0
        %v1743 = vadd.f32 %v1655, %v1742
        %v1744 = vpop.f32.mrb[0].mxu0
        %1745 = vmatprep.mubr.f32.mxu0 0.0
        %1746 = vmatmul.mubr.f32.gmra.mrb[0].mxu0 %v1649
        %v1747 = vpop.f32.mrb[0].mxu0
        %v1748 = vadd.f32 %v1655, %v1747
        %v1749 = vpop.f32.mrb[0].mxu0
        %1750 = vmatprep.mubr.f32.mxu0 0.0
        %1751 = vmatmul.mubr.f32.gmra.mrb[0].mxu0 %v1650
        %v1752 = vpop.f32.mrb[0].mxu0
        %v1753 = vadd.f32 %v1655, %v1752
        %v1754 = vpop.f32.mrb[0].mxu0
        %1755 = vmatprep.mubr.f32.mxu0 0.0
        %1756 = vmatmul.mubr.f32.gmra.mrb[0].mxu0 %v1651
        %v1757 = vpop.f32.mrb[0].mxu0
        %v1758 = vadd.f32 %v1655, %v1757
        %v1759 = vpop.f32.mrb[0].mxu0
        %1760 = vdwg.mxu0
        %v1761 = vadd.f32 %v1723, 29.406033
        %v1762 = vadd.f32 %v1728, 29.406033
        %v1763 = vadd.f32 %v1733, 29.406033
        %v1764 = vadd.f32 %v1738, 29.406033
        %v1765 = vadd.f32 %v1743, 29.406033
        %v1766 = vadd.f32 %v1748, 29.406033
        %v1767 = vadd.f32 %v1753, 29.406033
        %v1768 = vadd.f32 %v1758, 29.406033
        %v1769 = vmul.f32 %v1761, -0.5
        %v1770 = vmul.f32 %v1762, -0.5
        %v1771 = vmul.f32 %v1763, -0.5
        %v1772 = vmul.f32 %v1764, -0.5
        %v1773 = vmul.f32 %v1765, -0.5
        %v1774 = vmul.f32 %v1766, -0.5
        %v1775 = vmul.f32 %v1767, -0.5
        %v1776 = vmul.f32 %v1768, -0.5
        %v1777 = vadd.f32 %v1639, 1e-08
        %v1778 = vlog2.pop %v1777
        %v1779 = vmul.f32 %v1778, 0.6931472
        %v1781 = vlaneseq
        %v1782 = vshrl.u32 %v1781, 7
        %v1783 = vsub.s32 0, %v1782
        %v1784 = vrot.slane %v1779, %v1783
        %v1786 = vadd.f32 %v1769, %v1784
        %v1787 = vadd.f32 %v1770, %v1784
        %v1788 = vadd.f32 %v1771, %v1784
        %v1789 = vadd.f32 %v1772, %v1784
        %v1790 = vadd.f32 %v1773, %v1784
        %v1791 = vadd.f32 %v1774, %v1784
        %v1792 = vadd.f32 %v1775, %v1784
        %v1793 = vadd.f32 %v1776, %v1784
        %v1794 = vsel %vm646, %v1786, -inf
        %1795 = vmax.xlane.f32.xlu0 %v1794
        %v1796 = vpop.xlane.xlu0 %1795
        %v1797 = vsel %vm646, %v1787, -inf
        %1798 = vmax.xlane.f32.xlu0 %v1797
        %v1799 = vpop.xlane.xlu0 %1798
        %v1800 = vsel %vm646, %v1788, -inf
        %1801 = vmax.xlane.f32.xlu0 %v1800
        %v1802 = vpop.xlane.xlu0 %1801
        %v1803 = vsel %vm646, %v1789, -inf
        %1804 = vmax.xlane.f32.xlu0 %v1803
        %v1805 = vpop.xlane.xlu0 %1804
        %v1806 = vsel %vm646, %v1790, -inf
        %1807 = vmax.xlane.f32.xlu0 %v1806
        %v1808 = vpop.xlane.xlu0 %1807
        %v1809 = vsel %vm646, %v1791, -inf
        %1810 = vmax.xlane.f32.xlu0 %v1809
        %v1811 = vpop.xlane.xlu0 %1810
        %v1812 = vsel %vm646, %v1792, -inf
        %1813 = vmax.xlane.f32.xlu0 %v1812
        %v1814 = vpop.xlane.xlu0 %1813
        %v1815 = vsel %vm646, %v1793, -inf
        %1816 = vmax.xlane.f32.xlu0 %v1815
        %v1817 = vpop.xlane.xlu0 %1816
        %v1818 = vsub.f32 %v1786, %v1796
        %v1819 = vsub.f32 %v1787, %v1799
        %v1820 = vsub.f32 %v1788, %v1802
        %v1821 = vsub.f32 %v1789, %v1805
        %v1822 = vsub.f32 %v1790, %v1808
        %v1823 = vsub.f32 %v1791, %v1811
        %v1824 = vsub.f32 %v1792, %v1814
        %v1825 = vsub.f32 %v1793, %v1817
        %v1826 = vmul.f32 %v1818, 1.442695
        %v1827 = vpow.pop %v1826
        %v1828 = vmul.f32 %v1819, 1.442695
        %v1829 = vpow.pop %v1828
        %v1830 = vmul.f32 %v1820, 1.442695
        %v1831 = vpow.pop %v1830
        %v1832 = vmul.f32 %v1821, 1.442695
        %v1833 = vpow.pop %v1832
        %v1834 = vmul.f32 %v1822, 1.442695
        %v1835 = vpow.pop %v1834
        %v1836 = vmul.f32 %v1823, 1.442695
        %v1837 = vpow.pop %v1836
        %v1838 = vmul.f32 %v1824, 1.442695
        %v1839 = vpow.pop %v1838
        %v1840 = vmul.f32 %v1825, 1.442695
        %v1841 = vpow.pop %v1840
        %v1842 = vsel %vm646, %v1827, 0.0
        %1843 = vadd.xlane.f32.xlu0 %v1842
        %v1844 = vpop.xlane.xlu0 %1843
        %v1845 = vsel %vm646, %v1829, 0.0
        %1846 = vadd.xlane.f32.xlu0 %v1845
        %v1847 = vpop.xlane.xlu0 %1846
        %v1848 = vsel %vm646, %v1831, 0.0
        %1849 = vadd.xlane.f32.xlu0 %v1848
        %v1850 = vpop.xlane.xlu0 %1849
        %v1851 = vsel %vm646, %v1833, 0.0
        %1852 = vadd.xlane.f32.xlu0 %v1851
        %v1853 = vpop.xlane.xlu0 %1852
        %v1854 = vsel %vm646, %v1835, 0.0
        %1855 = vadd.xlane.f32.xlu0 %v1854
        %v1856 = vpop.xlane.xlu0 %1855
        %v1857 = vsel %vm646, %v1837, 0.0
        %1858 = vadd.xlane.f32.xlu0 %v1857
        %v1859 = vpop.xlane.xlu0 %1858
        %v1860 = vsel %vm646, %v1839, 0.0
        %1861 = vadd.xlane.f32.xlu0 %v1860
        %v1862 = vpop.xlane.xlu0 %1861
        %v1863 = vsel %vm646, %v1841, 0.0
        %1864 = vadd.xlane.f32.xlu0 %v1863
        %v1865 = vpop.xlane.xlu0 %1864
        %v1866 = vadd.f32 %v1844, 1e-08
        %v1867 = vadd.f32 %v1847, 1e-08
        %v1868 = vadd.f32 %v1850, 1e-08
        %v1869 = vadd.f32 %v1853, 1e-08
        %v1870 = vadd.f32 %v1856, 1e-08
        %v1871 = vadd.f32 %v1859, 1e-08
        %v1872 = vadd.f32 %v1862, 1e-08
        %v1873 = vadd.f32 %v1865, 1e-08
        %v1874 = vrcp.pop %v1866
        %v1875 = vmul.f32 1.0, %v1874
        %v1876 = vrcp.pop %v1867
        %v1877 = vmul.f32 1.0, %v1876
        %v1878 = vrcp.pop %v1868
        %v1879 = vmul.f32 1.0, %v1878
        %v1880 = vrcp.pop %v1869
        %v1881 = vmul.f32 1.0, %v1880
        %v1882 = vrcp.pop %v1870
        %v1883 = vmul.f32 1.0, %v1882
        %v1884 = vrcp.pop %v1871
        %v1885 = vmul.f32 1.0, %v1884
        %v1886 = vrcp.pop %v1872
        %v1887 = vmul.f32 1.0, %v1886
        %v1888 = vrcp.pop %v1873
        %v1889 = vmul.f32 1.0, %v1888
        %v1890 = vmul.f32 %v1827, %v1875
        %v1891 = vmul.f32 %v1829, %v1877
        %v1892 = vmul.f32 %v1831, %v1879
        %v1893 = vmul.f32 %v1833, %v1881
        %v1894 = vmul.f32 %v1835, %v1883
        %v1895 = vmul.f32 %v1837, %v1885
        %v1896 = vmul.f32 %v1839, %v1887
        %v1897 = vmul.f32 %v1841, %v1889
        %v1898 = vmul.f32 %v1890, %v585
        %v1899 = vmul.f32 %v1891, %v590
        %v1900 = vmul.f32 %v1892, %v595
        %v1901 = vmul.f32 %v1893, %v600
        %v1902 = vmul.f32 %v1894, %v605
        %v1903 = vmul.f32 %v1895, %v610
        %v1904 = vmul.f32 %v1896, %v615
        %v1905 = vmul.f32 %v1897, %v620
        %v1906 = vsel %vm646, %v1898, 0.0
        %v1907 = vsel %vm646, %v1899, 0.0
        %v1908 = vadd.f32 %v1906, %v1907
        %v1909 = vsel %vm646, %v1900, 0.0
        %v1910 = vadd.f32 %v1908, %v1909
        %v1911 = vsel %vm646, %v1901, 0.0
        %v1912 = vadd.f32 %v1910, %v1911
        %v1913 = vsel %vm646, %v1902, 0.0
        %v1914 = vadd.f32 %v1912, %v1913
        %v1915 = vsel %vm646, %v1903, 0.0
        %v1916 = vadd.f32 %v1914, %v1915
        %v1917 = vsel %vm646, %v1904, 0.0
        %v1918 = vadd.f32 %v1916, %v1917
        %v1919 = vsel %vm646, %v1905, 0.0
        %v1920 = vadd.f32 %v1918, %v1919
        %v1921 = vrot.slane %v1920, 4
        %v1922 = vadd.f32 %v1920, %v1921
        %v1923 = vrot.slane %v1922, 2
        %v1924 = vadd.f32 %v1922, %v1923
        %v1925 = vrot.slane %v1924, 1
        %v1926 = vadd.f32 %v1924, %v1925
        %v1927 = vadd.f32 %v1926, 1e-08
        %v1928 = vrcp.pop %v1927
        %v1929 = vmul.f32 1.0, %v1928
        %v1931 = vsel %vm646, %v1898, 0
        %v1934 = vsel %vm646, %v1899, 0
        %v1937 = vsel %vm646, %v1900, 0
        %v1940 = vsel %vm646, %v1901, 0
        %v1943 = vsel %vm646, %v1902, 0
        %v1946 = vsel %vm646, %v1903, 0
        %v1949 = vsel %vm646, %v1904, 0
        %v1952 = vsel %vm646, %v1905, 0
        %1954 = vmatprep.subr.mxu0 0.0
        %1955 = vmatpush1.msra.mxu0 %v316
        %1956 = vmatprep.subr.mxu0 0.0
        %1957 = vmatpush1.msra.mxu0 0.0
        %1958 = vmatprep.subr.mxu0 0.0
        %1959 = vmatpush1.msra.mxu0 0.0
        %1960 = vmatprep.subr.mxu0 0.0
        %1961 = vmatpush1.msra.mxu0 0.0
        %1962 = vmatprep.subr.mxu0 0.0
        %1963 = vmatpush1.msra.mxu0 0.0
        %1964 = vmatprep.subr.mxu0 0.0
        %1965 = vmatpush1.msra.mxu0 0.0
        %1966 = vmatprep.subr.mxu0 0.0
        %1967 = vmatpush1.msra.mxu0 0.0
        %1968 = vmatprep.subr.mxu0 0.0
        %1969 = vmatpush1.msra.mxu0 0.0
        %1970 = vmatprep.subr.mxu0 0.0
        %1971 = vmatpush1.msra.mxu0 0.0
        %1972 = vmatprep.subr.mxu0 0.0
        %1973 = vmatpush1.msra.mxu0 0.0
        %1974 = vmatprep.subr.mxu0 0.0
        %1975 = vmatpush1.msra.mxu0 0.0
        %1976 = vmatprep.subr.mxu0 0.0
        %1977 = vmatpush1.msra.mxu0 0.0
        %1978 = vmatprep.subr.mxu0 0.0
        %1979 = vmatpush1.msra.mxu0 0.0
        %1980 = vmatprep.subr.mxu0 0.0
        %1981 = vmatpush1.msra.mxu0 0.0
        %1982 = vmatprep.subr.mxu0 0.0
        %1983 = vmatpush1.msra.mxu0 0.0
        %1984 = vmatprep.subr.mxu0 0.0
        %1985 = vmatpush1.msra.mxu0 0.0
        %1986 = vmatprep.subr.mxu0 0.0
        %1987 = vmatpush1.msra.mxu0 0.0
        %1988 = vmatprep.subr.mxu0 0.0
        %1989 = vmatpush1.msra.mxu0 0.0
        %1990 = vmatprep.subr.mxu0 0.0
        %1991 = vmatpush1.msra.mxu0 0.0
        %1992 = vmatprep.subr.mxu0 0.0
        %1993 = vmatpush1.msra.mxu0 0.0
        %1994 = vmatprep.subr.mxu0 0.0
        %1995 = vmatpush1.msra.mxu0 0.0
        %1996 = vmatprep.subr.mxu0 0.0
        %1997 = vmatpush1.msra.mxu0 0.0
        %1998 = vmatprep.subr.mxu0 0.0
        %1999 = vmatpush1.msra.mxu0 0.0
        %2000 = vmatprep.subr.mxu0 0.0
        %2001 = vmatpush1.msra.mxu0 0.0
        %2002 = vmatprep.subr.mxu0 0.0
        %2003 = vmatpush1.msra.mxu0 0.0
        %2004 = vmatprep.subr.mxu0 0.0
        %2005 = vmatpush1.msra.mxu0 0.0
        %2006 = vmatprep.subr.mxu0 0.0
        %2007 = vmatpush1.msra.mxu0 0.0
        %2008 = vmatprep.subr.mxu0 0.0
        %2009 = vmatpush1.msra.mxu0 0.0
        %2010 = vmatprep.subr.mxu0 0.0
        %2011 = vmatpush1.msra.mxu0 0.0
        %2012 = vmatprep.subr.mxu0 0.0
        %2013 = vmatpush1.msra.mxu0 0.0
        %2014 = vmatprep.subr.mxu0 0.0
        %2015 = vmatpush1.msra.mxu0 0.0
        %2016 = vmatprep.subr.mxu0 0.0
        %2017 = vmatpush1.msra.mxu0 0.0
        %2018 = vmatprep.mubr.f32.mxu0 0.0
        %2019 = vmatmul.mubr.f32.gmra.mrb[0].mxu0 %v1931
        %v2020 = vpop.f32.mrb[0].mxu0
        %v2021 = vadd.f32 0.0, %v2020
        %v2022 = vpop.f32.mrb[0].mxu0
        %2023 = vmatprep.mubr.f32.mxu0 0.0
        %2024 = vmatmul.mubr.f32.gmra.mrb[0].mxu0 %v1934
        %v2025 = vpop.f32.mrb[0].mxu0
        %v2026 = vadd.f32 0.0, %v2025
        %v2027 = vpop.f32.mrb[0].mxu0
        %2028 = vmatprep.mubr.f32.mxu0 0.0
        %2029 = vmatmul.mubr.f32.gmra.mrb[0].mxu0 %v1937
        %v2030 = vpop.f32.mrb[0].mxu0
        %v2031 = vadd.f32 0.0, %v2030
        %v2032 = vpop.f32.mrb[0].mxu0
        %2033 = vmatprep.mubr.f32.mxu0 0.0
        %2034 = vmatmul.mubr.f32.gmra.mrb[0].mxu0 %v1940
        %v2035 = vpop.f32.mrb[0].mxu0
        %v2036 = vadd.f32 0.0, %v2035
        %v2037 = vpop.f32.mrb[0].mxu0
        %2038 = vmatprep.mubr.f32.mxu0 0.0
        %2039 = vmatmul.mubr.f32.gmra.mrb[0].mxu0 %v1943
        %v2040 = vpop.f32.mrb[0].mxu0
        %v2041 = vadd.f32 0.0, %v2040
        %v2042 = vpop.f32.mrb[0].mxu0
        %2043 = vmatprep.mubr.f32.mxu0 0.0
        %2044 = vmatmul.mubr.f32.gmra.mrb[0].mxu0 %v1946
        %v2045 = vpop.f32.mrb[0].mxu0
        %v2046 = vadd.f32 0.0, %v2045
        %v2047 = vpop.f32.mrb[0].mxu0
        %2048 = vmatprep.mubr.f32.mxu0 0.0
        %2049 = vmatmul.mubr.f32.gmra.mrb[0].mxu0 %v1949
        %v2050 = vpop.f32.mrb[0].mxu0
        %v2051 = vadd.f32 0.0, %v2050
        %v2052 = vpop.f32.mrb[0].mxu0
        %2053 = vmatprep.mubr.f32.mxu0 0.0
        %2054 = vmatmul.mubr.f32.gmra.mrb[0].mxu0 %v1952
        %v2055 = vpop.f32.mrb[0].mxu0
        %v2056 = vadd.f32 0.0, %v2055
        %v2057 = vpop.f32.mrb[0].mxu0
        %2058 = vdwg.mxu0
        %v2060 = vsel %vm646, %v1929, 0
        %2062 = vmatprep.subr.mxu0 0.0
        %2063 = vmatpush1.msra.mxu0 %v316
        %2064 = vmatprep.subr.mxu0 0.0
        %2065 = vmatpush1.msra.mxu0 0.0
        %2066 = vmatprep.subr.mxu0 0.0
        %2067 = vmatpush1.msra.mxu0 0.0
        %2068 = vmatprep.subr.mxu0 0.0
        %2069 = vmatpush1.msra.mxu0 0.0
        %2070 = vmatprep.subr.mxu0 0.0
        %2071 = vmatpush1.msra.mxu0 0.0
        %2072 = vmatprep.subr.mxu0 0.0
        %2073 = vmatpush1.msra.mxu0 0.0
        %2074 = vmatprep.subr.mxu0 0.0
        %2075 = vmatpush1.msra.mxu0 0.0
        %2076 = vmatprep.subr.mxu0 0.0
        %2077 = vmatpush1.msra.mxu0 0.0
        %2078 = vmatprep.subr.mxu0 0.0
        %2079 = vmatpush1.msra.mxu0 0.0
        %2080 = vmatprep.subr.mxu0 0.0
        %2081 = vmatpush1.msra.mxu0 0.0
        %2082 = vmatprep.subr.mxu0 0.0
        %2083 = vmatpush1.msra.mxu0 0.0
        %2084 = vmatprep.subr.mxu0 0.0
        %2085 = vmatpush1.msra.mxu0 0.0
        %2086 = vmatprep.subr.mxu0 0.0
        %2087 = vmatpush1.msra.mxu0 0.0
        %2088 = vmatprep.subr.mxu0 0.0
        %2089 = vmatpush1.msra.mxu0 0.0
        %2090 = vmatprep.subr.mxu0 0.0
        %2091 = vmatpush1.msra.mxu0 0.0
        %2092 = vmatprep.subr.mxu0 0.0
        %2093 = vmatpush1.msra.mxu0 0.0
        %2094 = vmatprep.subr.mxu0 0.0
        %2095 = vmatpush1.msra.mxu0 0.0
        %2096 = vmatprep.subr.mxu0 0.0
        %2097 = vmatpush1.msra.mxu0 0.0
        %2098 = vmatprep.subr.mxu0 0.0
        %2099 = vmatpush1.msra.mxu0 0.0
        %2100 = vmatprep.subr.mxu0 0.0
        %2101 = vmatpush1.msra.mxu0 0.0
        %2102 = vmatprep.subr.mxu0 0.0
        %2103 = vmatpush1.msra.mxu0 0.0
        %2104 = vmatprep.subr.mxu0 0.0
        %2105 = vmatpush1.msra.mxu0 0.0
        %2106 = vmatprep.subr.mxu0 0.0
        %2107 = vmatpush1.msra.mxu0 0.0
        %2108 = vmatprep.subr.mxu0 0.0
        %2109 = vmatpush1.msra.mxu0 0.0
        %2110 = vmatprep.subr.mxu0 0.0
        %2111 = vmatpush1.msra.mxu0 0.0
        %2112 = vmatprep.subr.mxu0 0.0
        %2113 = vmatpush1.msra.mxu0 0.0
        %2114 = vmatprep.subr.mxu0 0.0
        %2115 = vmatpush1.msra.mxu0 0.0
        %2116 = vmatprep.subr.mxu0 0.0
        %2117 = vmatpush1.msra.mxu0 0.0
        %2118 = vmatprep.subr.mxu0 0.0
        %2119 = vmatpush1.msra.mxu0 0.0
        %2120 = vmatprep.subr.mxu0 0.0
        %2121 = vmatpush1.msra.mxu0 0.0
        %2122 = vmatprep.subr.mxu0 0.0
        %2123 = vmatpush1.msra.mxu0 0.0
        %2124 = vmatprep.subr.mxu0 0.0
        %2125 = vmatpush1.msra.mxu0 0.0
        %2126 = vmatprep.mubr.f32.mxu0 0.0
        %2127 = vmatmul.mubr.f32.gmra.mrb[0].mxu0 %v2060
        %v2128 = vpop.f32.mrb[0].mxu0
        %v2129 = vadd.f32 0.0, %v2128
        %v2130 = vpop.f32.mrb[0].mxu0
        %2131 = vdwg.mxu0
        %v2132 = vmul.f32 %v2021, %v534
        %v2133 = vmul.f32 %v2026, %v539
        %v2134 = vmul.f32 %v2031, %v544
        %v2135 = vmul.f32 %v2036, %v549
        %v2136 = vmul.f32 %v2041, %v554
        %v2137 = vmul.f32 %v2046, %v559
        %v2138 = vmul.f32 %v2051, %v564
        %v2139 = vmul.f32 %v2056, %v569
        %v2140 = vadd.f32 %v2132, %v2133
        %v2141 = vadd.f32 %v2140, %v2134
        %v2142 = vadd.f32 %v2141, %v2135
        %v2143 = vadd.f32 %v2142, %v2136
        %v2144 = vadd.f32 %v2143, %v2137
        %v2145 = vadd.f32 %v2144, %v2138
        %v2146 = vadd.f32 %v2145, %v2139
        %v2147 = vrot.slane %v2146, 4
        %v2148 = vadd.f32 %v2146, %v2147
        %v2149 = vrot.slane %v2148, 2
        %v2150 = vadd.f32 %v2148, %v2149
        %v2151 = vrot.slane %v2150, 1
        %v2152 = vadd.f32 %v2150, %v2151
        %v2153 = vmul.f32 %v2152, %v2129
        %v2154 = vlaneseq
        %v2155 = vshrl.u32 %v2154, 7
        %v2156 = vsub.s32 0, %v2155
        %v2157 = vrot.slane %v2153, %v2156
        %v2158 = vsub.f32 %v534, %v2157
        %v2159 = vsub.f32 %v539, %v2157
        %v2160 = vsub.f32 %v544, %v2157
        %v2161 = vsub.f32 %v549, %v2157
        %v2162 = vsub.f32 %v554, %v2157
        %v2163 = vsub.f32 %v559, %v2157
        %v2164 = vsub.f32 %v564, %v2157
        %v2165 = vsub.f32 %v569, %v2157
        %v2166 = vmul.f32 %v2158, %v2158
        %v2167 = vmul.f32 %v2159, %v2159
        %v2168 = vmul.f32 %v2160, %v2160
        %v2169 = vmul.f32 %v2161, %v2161
        %v2170 = vmul.f32 %v2162, %v2162
        %v2171 = vmul.f32 %v2163, %v2163
        %v2172 = vmul.f32 %v2164, %v2164
        %v2173 = vmul.f32 %v2165, %v2165
        %v2174 = vmul.f32 %v2021, %v2166
        %v2175 = vmul.f32 %v2026, %v2167
        %v2176 = vmul.f32 %v2031, %v2168
        %v2177 = vmul.f32 %v2036, %v2169
        %v2178 = vmul.f32 %v2041, %v2170
        %v2179 = vmul.f32 %v2046, %v2171
        %v2180 = vmul.f32 %v2051, %v2172
        %v2181 = vmul.f32 %v2056, %v2173
        %v2182 = vadd.f32 %v2174, %v2175
        %v2183 = vadd.f32 %v2182, %v2176
        %v2184 = vadd.f32 %v2183, %v2177
        %v2185 = vadd.f32 %v2184, %v2178
        %v2186 = vadd.f32 %v2185, %v2179
        %v2187 = vadd.f32 %v2186, %v2180
        %v2188 = vadd.f32 %v2187, %v2181
        %v2189 = vrot.slane %v2188, 4
        %v2190 = vadd.f32 %v2188, %v2189
        %v2191 = vrot.slane %v2190, 2
        %v2192 = vadd.f32 %v2190, %v2191
        %v2193 = vrot.slane %v2192, 1
        %v2194 = vadd.f32 %v2192, %v2193
        %v2195 = vmul.f32 %v2194, %v2129
        %v2196 = vadd.f32 %v2195, 1e-08
        %v2197 = vlog2.pop %v2196
        %v2198 = vmul.f32 %v2197, 0.6931472
        %2199 = vmatprep.subr.mxu0 0.0
        %2200 = vmatpush1.msra.mxu0 %v399
        %2201 = vmatprep.subr.mxu0 0.0
        %2202 = vmatpush1.msra.mxu0 %v400
        %2203 = vmatprep.subr.mxu0 0.0
        %2204 = vmatpush1.msra.mxu0 %v401
        %2205 = vmatprep.subr.mxu0 0.0
        %2206 = vmatpush1.msra.mxu0 %v402
        %2207 = vmatprep.subr.mxu0 0.0
        %2208 = vmatpush1.msra.mxu0 %v403
        %2209 = vmatprep.subr.mxu0 0.0
        %2210 = vmatpush1.msra.mxu0 %v404
        %2211 = vmatprep.subr.mxu0 0.0
        %2212 = vmatpush1.msra.mxu0 %v405
        %2213 = vmatprep.subr.mxu0 0.0
        %2214 = vmatpush1.msra.mxu0 %v406
        %2215 = vmatprep.subr.mxu0 0.0
        %2216 = vmatpush1.msra.mxu0 %v407
        %2217 = vmatprep.subr.mxu0 0.0
        %2218 = vmatpush1.msra.mxu0 %v408
        %2219 = vmatprep.subr.mxu0 0.0
        %2220 = vmatpush1.msra.mxu0 %v409
        %2221 = vmatprep.subr.mxu0 0.0
        %2222 = vmatpush1.msra.mxu0 %v410
        %2223 = vmatprep.subr.mxu0 0.0
        %2224 = vmatpush1.msra.mxu0 %v411
        %2225 = vmatprep.subr.mxu0 0.0
        %2226 = vmatpush1.msra.mxu0 %v412
        %2227 = vmatprep.subr.mxu0 0.0
        %2228 = vmatpush1.msra.mxu0 %v413
        %2229 = vmatprep.subr.mxu0 0.0
        %2230 = vmatpush1.msra.mxu0 %v414
        %2231 = vmatprep.subr.mxu0 0.0
        %2232 = vmatpush1.msra.mxu0 0.0
        %2233 = vmatprep.subr.mxu0 0.0
        %2234 = vmatpush1.msra.mxu0 0.0
        %2235 = vmatprep.subr.mxu0 0.0
        %2236 = vmatpush1.msra.mxu0 0.0
        %2237 = vmatprep.subr.mxu0 0.0
        %2238 = vmatpush1.msra.mxu0 0.0
        %2239 = vmatprep.subr.mxu0 0.0
        %2240 = vmatpush1.msra.mxu0 0.0
        %2241 = vmatprep.subr.mxu0 0.0
        %2242 = vmatpush1.msra.mxu0 0.0
        %2243 = vmatprep.subr.mxu0 0.0
        %2244 = vmatpush1.msra.mxu0 0.0
        %2245 = vmatprep.subr.mxu0 0.0
        %2246 = vmatpush1.msra.mxu0 0.0
        %2247 = vmatprep.subr.mxu0 0.0
        %2248 = vmatpush1.msra.mxu0 0.0
        %2249 = vmatprep.subr.mxu0 0.0
        %2250 = vmatpush1.msra.mxu0 0.0
        %2251 = vmatprep.subr.mxu0 0.0
        %2252 = vmatpush1.msra.mxu0 0.0
        %2253 = vmatprep.subr.mxu0 0.0
        %2254 = vmatpush1.msra.mxu0 0.0
        %2255 = vmatprep.subr.mxu0 0.0
        %2256 = vmatpush1.msra.mxu0 0.0
        %2257 = vmatprep.subr.mxu0 0.0
        %2258 = vmatpush1.msra.mxu0 0.0
        %2259 = vmatprep.subr.mxu0 0.0
        %2260 = vmatpush1.msra.mxu0 0.0
        %2261 = vmatprep.subr.mxu0 0.0
        %2262 = vmatpush1.msra.mxu0 0.0
        %2263 = vmatprep.mubr.f32.mxu0 0.0
        %2264 = vmatmul.mubr.f32.gmra.mrb[0].mxu0 %v2198
        %v2265 = vpop.f32.mrb[0].mxu0
        %v2266 = vadd.f32 0.0, %v2265
        %v2267 = vpop.f32.mrb[0].mxu0
        %2268 = vdwg.mxu0
        %v2269 = vmul.f32 %v2266, 0.5
        %v2270 = vadd.f32 %v988, %v2269
        %v2271 = vmul.f32 %v1927, %v2270
        %v2272 = vsub.f32 %v581, %v2271
        %v2273 = vmul.f32 %v2272, -0.01
        %v2274 = vmul.f32 %v2273, 1.442695
        %v2275 = vpow.pop %v2274
        %v2276 = vadd.f32 %v2275, 1.0
        %v2277 = vrcp.pop %v2276
        %v2278 = vmul.f32 1.0, %v2277
        %2279 = vst [vmem:[%s304] sm:$0x1] %v2153
        %v2281 = vsel %vm646, %v2278, 0
        %2283 = vmatprep.subr.mxu0 0.0
        %2284 = vmatpush1.msra.mxu0 %v417
        %2285 = vmatprep.subr.mxu0 0.0
        %2286 = vmatpush1.msra.mxu0 0.0
        %2287 = vmatprep.subr.mxu0 0.0
        %2288 = vmatpush1.msra.mxu0 0.0
        %2289 = vmatprep.subr.mxu0 0.0
        %2290 = vmatpush1.msra.mxu0 0.0
        %2291 = vmatprep.subr.mxu0 0.0
        %2292 = vmatpush1.msra.mxu0 0.0
        %2293 = vmatprep.subr.mxu0 0.0
        %2294 = vmatpush1.msra.mxu0 0.0
        %2295 = vmatprep.subr.mxu0 0.0
        %2296 = vmatpush1.msra.mxu0 0.0
        %2297 = vmatprep.subr.mxu0 0.0
        %2298 = vmatpush1.msra.mxu0 0.0
        %2299 = vmatprep.subr.mxu0 0.0
        %2300 = vmatpush1.msra.mxu0 0.0
        %2301 = vmatprep.subr.mxu0 0.0
        %2302 = vmatpush1.msra.mxu0 0.0
        %2303 = vmatprep.subr.mxu0 0.0
        %2304 = vmatpush1.msra.mxu0 0.0
        %2305 = vmatprep.subr.mxu0 0.0
        %2306 = vmatpush1.msra.mxu0 0.0
        %2307 = vmatprep.subr.mxu0 0.0
        %2308 = vmatpush1.msra.mxu0 0.0
        %2309 = vmatprep.subr.mxu0 0.0
        %2310 = vmatpush1.msra.mxu0 0.0
        %2311 = vmatprep.subr.mxu0 0.0
        %2312 = vmatpush1.msra.mxu0 0.0
        %2313 = vmatprep.subr.mxu0 0.0
        %2314 = vmatpush1.msra.mxu0 0.0
        %2315 = vmatprep.subr.mxu0 0.0
        %2316 = vmatpush1.msra.mxu0 0.0
        %2317 = vmatprep.subr.mxu0 0.0
        %2318 = vmatpush1.msra.mxu0 0.0
        %2319 = vmatprep.subr.mxu0 0.0
        %2320 = vmatpush1.msra.mxu0 0.0
        %2321 = vmatprep.subr.mxu0 0.0
        %2322 = vmatpush1.msra.mxu0 0.0
        %2323 = vmatprep.subr.mxu0 0.0
        %2324 = vmatpush1.msra.mxu0 0.0
        %2325 = vmatprep.subr.mxu0 0.0
        %2326 = vmatpush1.msra.mxu0 0.0
        %2327 = vmatprep.subr.mxu0 0.0
        %2328 = vmatpush1.msra.mxu0 0.0
        %2329 = vmatprep.subr.mxu0 0.0
        %2330 = vmatpush1.msra.mxu0 0.0
        %2331 = vmatprep.subr.mxu0 0.0
        %2332 = vmatpush1.msra.mxu0 0.0
        %2333 = vmatprep.subr.mxu0 0.0
        %2334 = vmatpush1.msra.mxu0 0.0
        %2335 = vmatprep.subr.mxu0 0.0
        %2336 = vmatpush1.msra.mxu0 0.0
        %2337 = vmatprep.subr.mxu0 0.0
        %2338 = vmatpush1.msra.mxu0 0.0
        %2339 = vmatprep.subr.mxu0 0.0
        %2340 = vmatpush1.msra.mxu0 0.0
        %2341 = vmatprep.subr.mxu0 0.0
        %2342 = vmatpush1.msra.mxu0 0.0
        %2343 = vmatprep.subr.mxu0 0.0
        %2344 = vmatpush1.msra.mxu0 0.0
        %2345 = vmatprep.subr.mxu0 0.0
        %2346 = vmatpush1.msra.mxu0 0.0
        %2347 = vmatprep.mubr.f32.mxu0 0.0
        %2348 = vmatmul.mubr.f32.gmra.mrb[0].mxu0 %v2281
        %v2349 = vpop.f32.mrb[0].mxu0
        %v2350 = vadd.f32 0.0, %v2349
        %v2351 = vpop.f32.mrb[0].mxu0
        %2352 = vdwg.mxu0
        %2353 = vst [vmem:[%s291] sm:$0x1] %v2350
        %p2354 = scmp.lt.s32.totalorder %s22, 1
        %s2355 = scalar_select %p2354, %s22, 1
        %s2356 = scalar_lea.vmem %s6, %s2355
        %s2357 = sand.u32 %s192, 1
        %s2358 = scalar_lea.sflag [#allocation3], %s2357
        %s2359 = sand.u32 %s192, 1
        %s2360 = scalar_lea.vmem [#allocation2], %s2359
        // Predicated region
        $region45: #{fccaps_matrix_forward.1} parent=43 // pred_check
          %p2361 = pneg %p176
        $region46: #{fccaps_matrix_forward.1} parent=43 // pred_check_branch
          %2363 = sbr.rel (%p2361) target = $region48
        $region47: #{fccaps_matrix_forward.1} parent=43 // pred_region
          _
        $region48: #{fccaps_matrix_forward.1} parent=43 // pred_fallthru
          _
        // Predicated region
        $region49: #{fccaps_matrix_forward.1} parent=43 // pred_check
          %p2364 = pneg %p202
        $region50: #{fccaps_matrix_forward.1} parent=43 // pred_check_branch
          %2366 = sbr.rel (%p2364) target = $region52
        $region51: #{fccaps_matrix_forward.1} parent=43 // pred_region
          %s2368 = ssub.s32 16, 16
          %2369 = vsyncadd %s2358, %s2368
          %s2370 = smul.addr %s22, 16
          %s2371 = scalar_lea.hbm %s7, %s2370
          %s2373 = sshll.u32 %s2360, 4
          %s2374 = int_to_ptr.vmem [resolvable:$true] %s2373
          %2376 = dma.vmem_to_hbm [thread:$0]  %s2374, 16, %s2371, %s2358
        $region52: #{fccaps_matrix_forward.1} parent=43 // pred_fallthru
          _
      $region44: #{fccaps_matrix_forward.1} parent=5 // pred_fallthru
        _
      %p2377 = scmp.le.s32.totalorder 2, %s17
      // Predicated region
      $region53: #{fccaps_matrix_forward.1} parent=5 // pred_check
        %p2378 = pneg %p2377
      $region54: #{fccaps_matrix_forward.1} parent=5 // pred_check_branch
        %2380 = sbr.rel (%p2378) target = $region56
      $region55: #{fccaps_matrix_forward.1} parent=5 // pred_region
        %s2381 = ssub.s32 %s17, 2
        // Predicated region
        $region57: #{fccaps_matrix_forward.1} parent=55 // pred_check
          %p2382 = pneg %p182
        $region58: #{fccaps_matrix_forward.1} parent=55 // pred_check_branch
          %2384 = sbr.rel (%p2382) target = $region60
        $region59: #{fccaps_matrix_forward.1} parent=55 // pred_region
          %p2385 = scmp.lt.s32.totalorder %s23, 1
          %s2386 = scalar_select %p2385, %s23, 1
          %s2387 = scalar_lea.vmem %s6, %s2386
        $region60: #{fccaps_matrix_forward.1} parent=55 // pred_fallthru
          _
        // Predicated region
        $region61: #{fccaps_matrix_forward.1} parent=55 // pred_check
          %p2388 = pneg %p208
        $region62: #{fccaps_matrix_forward.1} parent=55 // pred_check_branch
          %2390 = sbr.rel (%p2388) target = $region64
        $region63: #{fccaps_matrix_forward.1} parent=55 // pred_region
          %s2391 = sand.u32 %s193, 1
          %s2392 = scalar_lea.sflag [#allocation3], %s2391
          %s2393 = sand.u32 %s193, 1
          %s2394 = scalar_lea.vmem [#allocation2], %s2393
          %2395 = dma.done %s2392, 16
        $region64: #{fccaps_matrix_forward.1} parent=55 // pred_fallthru
          _
      $region56: #{fccaps_matrix_forward.1} parent=5 // pred_fallthru
        _
    $region6: #{fccaps_matrix_forward.1} parent=1 // loop_footer
      %s21 = sadd.s32 1, %s17
    $region7: #{fccaps_matrix_forward.1} parent=1 // loop_footer_branch
      %16 = sbr.rel target = $region3
    $region8: #{fccaps_matrix_forward.1} parent=1 // loop_exit
      _
    %2396 = vsyncpa [#allocation3], 1
    %s2397 = scalar_lea.sflag [#allocation3], 1
    %2398 = vsyncpa %s2397, 1

</llo_original>
